<compile_context>
chip_gen: v5e
topology: v5e:2x2
jax: 0.10.0
libtpu: 0.0.40
codegen_flags: <defaults>
</compile_context>

<pallas_src>
import functools

import jax
import jax.numpy as jnp
from jax import lax
from jax.experimental import pallas as pl
from jax.experimental.pallas import tpu as pltpu

EPS = 1e-5
DROP_P = 0.5
KEEP_SCALE = 1.0 / (1.0 - DROP_P)  # 2.0

# TODO(synk): PyTorch BatchNorm2d(track_running_stats=True) also updates
# running_mean/running_var as a training side effect; the forward output does
# not depend on them, so they are not computed here.


def _bn_relu_dropout_kernel(seed_ref, x_ref, gamma_ref, beta_ref, o_ref,
                            *, c_tile, total_cols):
    # x_ref: (c_tile, L) f32 in VMEM; gamma/beta: (c_tile, 1); seed_ref: SMEM (1,) i32.
    x = x_ref[...]
    L = x.shape[1]
    inv_L = 1.0 / L

    # --- BatchNorm2d, training mode: batch statistics, biased variance ---
    mean = jnp.sum(x, axis=1, keepdims=True) * inv_L
    mean_sq = jnp.sum(x * x, axis=1, keepdims=True) * inv_L
    var = mean_sq - mean * mean
    inv_std = lax.rsqrt(var + EPS)

    # Fold BN affine + dropout scale into per-channel a, b (scale > 0 commutes
    # with ReLU):  kept_out = max(x * a + b, 0)
    g_inv = gamma_ref[...] * inv_std
    a_c = g_inv * KEEP_SCALE
    b_c = (beta_ref[...] - mean * g_inv) * KEEP_SCALE
    y = jnp.maximum(x * a_c + b_c, 0.0)

    # --- Dropout(p=0.5) mask via counter-based hash (splitmix32 finalizer) ---
    c0 = pl.program_id(0) * c_tile
    row = lax.broadcasted_iota(jnp.int32, x.shape, 0) + c0
    col = lax.broadcasted_iota(jnp.int32, x.shape, 1)
    idx = (row * total_cols + col).astype(jnp.uint32)
    seed = seed_ref[0].astype(jnp.uint32)
    h = idx + seed * jnp.uint32(0x9E3779B9)
    h = h ^ (h >> 16)
    h = h * jnp.uint32(0x7FEB352D)
    h = h ^ (h >> 15)
    h = h * jnp.uint32(0x846CA68B)
    h = h ^ (h >> 16)
    keep = (h & jnp.uint32(0x80000000)) == jnp.uint32(0)  # P(keep) = 0.5

    o_ref[...] = jnp.where(keep, y, 0.0).astype(o_ref.dtype)


def bn_relu_dropout(x_nchw, gamma, beta, seed):
    N, C, H, W = x_nchw.shape
    L = N * H * W

    # NCHW -> (C, N*H*W).  With N == 1 this is a pure reshape (no HBM transpose).
    x2d = jnp.transpose(x_nchw, (1, 0, 2, 3)).reshape(C, L).astype(jnp.float32)
    gamma2d = gamma.reshape(C, 1).astype(jnp.float32)
    beta2d = beta.reshape(C, 1).astype(jnp.float32)
    seed_arr = jnp.asarray([seed], dtype=jnp.int32)

    # Channel tile: multiple of 8 (sublane), small step count (4 for C=256).
    c_tile = C
    for cand in (64, 32, 16, 8):
        if C % cand == 0:
            c_tile = cand
            break

    kernel = functools.partial(_bn_relu_dropout_kernel,
                               c_tile=c_tile, total_cols=L)

    out2d = pl.pallas_call(
        kernel,
        out_shape=jax.ShapeDtypeStruct((C, L), jnp.float32),
        grid_spec=pltpu.PrefetchScalarGridSpec(
            num_scalar_prefetch=1,
            grid=(C // c_tile,),
            in_specs=[
                pl.BlockSpec((c_tile, L), lambda i, seed_ref: (i, 0)),
                pl.BlockSpec((c_tile, 1), lambda i, seed_ref: (i, 0)),
                pl.BlockSpec((c_tile, 1), lambda i, seed_ref: (i, 0)),
            ],
            out_specs=pl.BlockSpec((c_tile, L), lambda i, seed_ref: (i, 0)),
        ),
        compiler_params=pltpu.CompilerParams(
            dimension_semantics=("parallel",)),
    )(seed_arr, x2d, gamma2d, beta2d)

    # (C, N*H*W) -> NCHW
    return jnp.transpose(out2d.reshape(C, N, H, W), (1, 0, 2, 3))


if __name__ == "__main__":
    key = jax.random.PRNGKey(0)
    kx, kg, kb = jax.random.split(key, 3)

    N, C, H, W = 1, 256, 28, 28  # matches the module's expected input
    x = jax.random.normal(kx, (N, C, H, W), dtype=jnp.float32)

    # BatchNorm2d default init (weight=1, bias=0), perturbed slightly so the
    # affine transform is actually exercised.
    gamma = jnp.ones((C,), jnp.float32) + 0.01 * jax.random.normal(kg, (C,), jnp.float32)
    beta = 0.01 * jax.random.normal(kb, (C,), jnp.float32)

    out = bn_relu_dropout(x, gamma, beta, seed=0)
    out = jax.block_until_ready(out)
    assert out.shape == (N, C, H, W)
    assert bool(jnp.all(jnp.isfinite(out)))

    # Sanity: kept elements must equal (1/(1-p)) * relu(batchnorm(x)),
    # and the keep rate over strictly-positive activations must be ~0.5.
    mean = x.mean(axis=(0, 2, 3), keepdims=True)
    var = x.var(axis=(0, 2, 3), keepdims=True)
    y_ref = (x - mean) / jnp.sqrt(var + EPS)
    y_ref = y_ref * gamma.reshape(1, C, 1, 1) + beta.reshape(1, C, 1, 1)
    y_ref = jnp.maximum(y_ref, 0.0) * KEEP_SCALE
    kept = out != 0.0
    assert jnp.allclose(jnp.where(kept, out, 0.0),
                        jnp.where(kept, y_ref, 0.0), atol=2e-3, rtol=2e-3)
    pos = y_ref > 0.0
    keep_frac = float(jnp.sum(kept & pos) / jnp.maximum(jnp.sum(pos), 1))
    assert 0.45 < keep_frac < 0.55

    print("KERNEL_OK")
</pallas_src>

<mosaic_0001>
module attributes {stable_mosaic.version = 11 : i64} {
  func.func @_bn_relu_dropout_kernel(%arg0: i32, %arg1: memref<1xi32, #tpu.memory_space<smem>>, %arg2: memref<64x784xf32, #tpu.memory_space<vmem>>, %arg3: memref<64x1xf32, #tpu.memory_space<vmem>>, %arg4: memref<64x1xf32, #tpu.memory_space<vmem>>, %arg5: memref<64x784xf32, #tpu.memory_space<vmem>>) attributes {dimension_semantics = [#tpu.dimension_semantics<parallel>], iteration_bounds = array<i64: 4>, scalar_prefetch = 1 : i64, scratch_operands = 0 : i64, tpu.core_type = #tpu.core_type<tc>, window_params = [{transform_indices = @transform_0, window_bounds = array<i64: 64, 784>}, {transform_indices = @transform_1, window_bounds = array<i64: 64, 1>}, {transform_indices = @transform_2, window_bounds = array<i64: 64, 1>}, {transform_indices = @transform_3, window_bounds = array<i64: 64, 784>}]} {
    %c0 = arith.constant 0 : index
    %c0_0 = arith.constant 0 : index
    %0 = vector.load %arg2[%c0, %c0_0] : memref<64x784xf32, #tpu.memory_space<vmem>>, vector<64x784xf32>
    %cst = arith.constant dense<0.000000e+00> : vector<64xf32>
    %1 = vector.multi_reduction <add>, %0, %cst [1] : vector<64x784xf32> to vector<64xf32>
    %2 = vector.shape_cast %1 : vector<64xf32> to vector<64x1xf32>
    %cst_1 = arith.constant 0.00127551018 : f32
    %3 = vector.broadcast %cst_1 : f32 to vector<64x1xf32>
    %4 = arith.mulf %2, %3 : vector<64x1xf32>
    %5 = arith.mulf %0, %0 : vector<64x784xf32>
    %cst_2 = arith.constant dense<0.000000e+00> : vector<64xf32>
    %6 = vector.multi_reduction <add>, %5, %cst_2 [1] : vector<64x784xf32> to vector<64xf32>
    %7 = vector.shape_cast %6 : vector<64xf32> to vector<64x1xf32>
    %cst_3 = arith.constant 0.00127551018 : f32
    %8 = vector.broadcast %cst_3 : f32 to vector<64x1xf32>
    %9 = arith.mulf %7, %8 : vector<64x1xf32>
    %10 = arith.mulf %4, %4 : vector<64x1xf32>
    %11 = arith.subf %9, %10 : vector<64x1xf32>
    %cst_4 = arith.constant 9.99999974E-6 : f32
    %12 = vector.broadcast %cst_4 : f32 to vector<64x1xf32>
    %13 = arith.addf %11, %12 : vector<64x1xf32>
    %14 = math.rsqrt %13 : vector<64x1xf32>
    %c0_5 = arith.constant 0 : index
    %c0_6 = arith.constant 0 : index
    %15 = vector.load %arg3[%c0_5, %c0_6] : memref<64x1xf32, #tpu.memory_space<vmem>>, vector<64x1xf32>
    %16 = arith.mulf %15, %14 : vector<64x1xf32>
    %cst_7 = arith.constant 2.000000e+00 : f32
    %17 = vector.broadcast %cst_7 : f32 to vector<64x1xf32>
    %18 = arith.mulf %16, %17 : vector<64x1xf32>
    %c0_8 = arith.constant 0 : index
    %c0_9 = arith.constant 0 : index
    %19 = vector.load %arg4[%c0_8, %c0_9] : memref<64x1xf32, #tpu.memory_space<vmem>>, vector<64x1xf32>
    %20 = arith.mulf %4, %16 : vector<64x1xf32>
    %21 = arith.subf %19, %20 : vector<64x1xf32>
    %cst_10 = arith.constant 2.000000e+00 : f32
    %22 = vector.broadcast %cst_10 : f32 to vector<64x1xf32>
    %23 = arith.mulf %21, %22 : vector<64x1xf32>
    %24 = vector.broadcast %18 : vector<64x1xf32> to vector<64x784xf32>
    %25 = arith.mulf %0, %24 : vector<64x784xf32>
    %26 = vector.broadcast %23 : vector<64x1xf32> to vector<64x784xf32>
    %27 = arith.addf %25, %26 : vector<64x784xf32>
    %cst_11 = arith.constant 0.000000e+00 : f32
    %28 = vector.broadcast %cst_11 : f32 to vector<64x784xf32>
    %29 = arith.maximumf %27, %28 : vector<64x784xf32>
    %c64_i32 = arith.constant 64 : i32
    %30 = arith.muli %arg0, %c64_i32 : i32
    %31 = tpu.iota {dimensions = array<i32: 0>} : vector<64x784xi32>
    %32 = vector.broadcast %30 : i32 to vector<64x784xi32>
    %33 = arith.addi %31, %32 : vector<64x784xi32>
    %34 = tpu.iota {dimensions = array<i32: 1>} : vector<64x784xi32>
    %c784_i32 = arith.constant 784 : i32
    %35 = vector.broadcast %c784_i32 : i32 to vector<64x784xi32>
    %36 = arith.muli %33, %35 : vector<64x784xi32>
    %37 = arith.addi %36, %34 : vector<64x784xi32>
    %c0_12 = arith.constant 0 : index
    %38 = memref.load %arg1[%c0_12] : memref<1xi32, #tpu.memory_space<smem>>
    %c-1640531527_i32 = arith.constant -1640531527 : i32
    %39 = arith.muli %38, %c-1640531527_i32 : i32
    %40 = vector.broadcast %39 : i32 to vector<64x784xi32>
    %41 = arith.addi %37, %40 : vector<64x784xi32>
    %c16_i32 = arith.constant 16 : i32
    %42 = vector.broadcast %c16_i32 : i32 to vector<64x784xi32>
    %43 = arith.shrui %41, %42 : vector<64x784xi32>
    %44 = arith.xori %41, %43 : vector<64x784xi32>
    %c2146121005_i32 = arith.constant 2146121005 : i32
    %45 = vector.broadcast %c2146121005_i32 : i32 to vector<64x784xi32>
    %46 = arith.muli %44, %45 : vector<64x784xi32>
    %c15_i32 = arith.constant 15 : i32
    %47 = vector.broadcast %c15_i32 : i32 to vector<64x784xi32>
    %48 = arith.shrui %46, %47 : vector<64x784xi32>
    %49 = arith.xori %46, %48 : vector<64x784xi32>
    %c-2073254261_i32 = arith.constant -2073254261 : i32
    %50 = vector.broadcast %c-2073254261_i32 : i32 to vector<64x784xi32>
    %51 = arith.muli %49, %50 : vector<64x784xi32>
    %c16_i32_13 = arith.constant 16 : i32
    %52 = vector.broadcast %c16_i32_13 : i32 to vector<64x784xi32>
    %53 = arith.shrui %51, %52 : vector<64x784xi32>
    %54 = arith.xori %51, %53 : vector<64x784xi32>
    %c-2147483648_i32 = arith.constant -2147483648 : i32
    %55 = vector.broadcast %c-2147483648_i32 : i32 to vector<64x784xi32>
    %56 = arith.andi %54, %55 : vector<64x784xi32>
    %c0_i32 = arith.constant 0 : i32
    %57 = vector.broadcast %c0_i32 : i32 to vector<64x784xi32>
    %58 = arith.cmpi eq, %56, %57 : vector<64x784xi32>
    %cst_14 = arith.constant 0.000000e+00 : f32
    %59 = vector.broadcast %cst_14 : f32 to vector<64x784xf32>
    %60 = arith.select %58, %29, %59 : vector<64x784xi1>, vector<64x784xf32>
    %c0_15 = arith.constant 0 : index
    %c0_16 = arith.constant 0 : index
    %61 = vector.load %arg5[%c0_15, %c0_16] : memref<64x784xf32, #tpu.memory_space<vmem>>, vector<64x784xf32>
    tpu.vector_store %arg5[%c0_15, %c0_16], %60 {strides = array<i32>} : memref<64x784xf32, #tpu.memory_space<vmem>>, vector<64x784xf32>,
    return
  }
  func.func @transform_0(%arg0: i32, %arg1: memref<1xi32, #tpu.memory_space<smem>>) -> (i32, i32) {
    %c0_i32 = arith.constant 0 : i32
    %c0_i32_0 = arith.constant 0 : i32
    return %arg0, %c0_i32 : i32, i32
  }
  func.func @transform_1(%arg0: i32, %arg1: memref<1xi32, #tpu.memory_space<smem>>) -> (i32, i32) {
    %c0_i32 = arith.constant 0 : i32
    %c0_i32_0 = arith.constant 0 : i32
    return %arg0, %c0_i32 : i32, i32
  }
  func.func @transform_2(%arg0: i32, %arg1: memref<1xi32, #tpu.memory_space<smem>>) -> (i32, i32) {
    %c0_i32 = arith.constant 0 : i32
    %c0_i32_0 = arith.constant 0 : i32
    return %arg0, %c0_i32 : i32, i32
  }
  func.func @transform_3(%arg0: i32, %arg1: memref<1xi32, #tpu.memory_space<smem>>) -> (i32, i32) {
    %c0_i32 = arith.constant 0 : i32
    %c0_i32_0 = arith.constant 0 : i32
    return %arg0, %c0_i32 : i32, i32
  }
}

</mosaic_0001>

<llo_original>
// kernel: tpu_custom_call.1
$region0: #{tpu_custom_call.1}
  #allocation0 [shape = 'u32[]', space=smem, size = 0x4, offset = 0x4, fixed_abs, tag = 'smem constant byte address 0x4 - core index']
  #allocation1 [shape = 'u32[72,128]{1,0:T(1,128)}', space=vmem, size = 0x9000, scoped, tag = 'internal scratch']
  #allocation2 [shape = 's32[1]{0}', space=sflag, size = 0x4, scoped, tag = 'scoped memory for tpu_custom_call.1']
  #allocation3 [shape = 's32[1]{0:T(128)S(6)}', space=smem, size = 0x200, scoped, tag = 'prefetched SMEM operand 0']
  %s0 = inlined_call_operand.<no memory space> [shape: s32[1], index: 0, kind: input, shape index: {}]
  %s1 = inlined_call_operand.vmem [shape: f32[256,784], index: 1, kind: input, shape index: {}]
  %s2 = inlined_call_operand.vmem [shape: f32[256,1], index: 2, kind: input, shape index: {}]
  %s3 = inlined_call_operand.vmem [shape: f32[256,1], index: 3, kind: input, shape index: {}]
  %s4 = inlined_call_operand.vmem [shape: f32[256,784], index: 4, kind: output, shape index: {}]
  %s5 = sld [smem:[#allocation0]]
  $region45: #{tpu_custom_call.1} parent=0
    _
  %s7 = ssub.s32 1, %s5
  %s8 = scalar_select 0, %s7, %s5
  %9 = sst [smem:[#allocation3]] %s0
  loop: start=0, step=1, limit=6
  $region2: #{tpu_custom_call.1} parent=0 // loop_pre_header
    _
  $region3: #{tpu_custom_call.1} parent=0 // loop_header
    %s11 = sphi 0, %s15
    %p12 = scmp.ge.s32.totalorder %s11, 6
    %s21 = sphi 0, %s23
    %s24 = sphi 0, %s21
    %s25 = sphi 0, %s24
    %s41 = sphi 0, %s25
    %s47 = sphi 0, %s49
    %s50 = sphi 0, %s47
    %s51 = sphi 0, %s50
    %s67 = sphi 0, %s51
    %s73 = sphi 0, %s75
    %s76 = sphi 0, %s73
    %s77 = sphi 0, %s76
    %s93 = sphi 0, %s77
    %s99 = sphi 0, %s101
    %s102 = sphi 0, %s99
    %s103 = sphi 0, %s102
    %s119 = sphi 0, %s103
  $region4: #{tpu_custom_call.1} parent=0 // loop_header_branch
    %14 = sbr.rel (%p12) target = $region8
  $region5: #{tpu_custom_call.1} parent=0 // loop_body
    %s16 = ssub.s32 %s11, 1
    %s17 = ssub.s32 %s11, 2
    %s18 = sadd.s32 %s11, 1
    %s19 = ssub.s32 %s11, %s18
    %p20 = scmp.eq.s32.totalorder %s19, 0
    %s22 = sadd.s32 %s21, 1
    %s23 = scalar_select %p20, %s21, %s22
    %p26 = pneg %p20
    %p27 = scmp.eq.s32.totalorder %s11, 3
    %p28 = por %p26, %p27
    %p29 = scmp.ne.s32.totalorder %s21, %s24
    %p30 = scmp.eq.s32.totalorder %s11, 0
    %p31 = por %p29, %p30
    %p32 = scmp.ne.s32.totalorder %s21, %s24
    %p33 = scmp.eq.s32.totalorder %s16, 3
    %p34 = por %p32, %p33
    %p35 = scmp.ne.s32.totalorder %s24, %s25
    %p36 = scmp.eq.s32.totalorder %s16, 0
    %p37 = por %p35, %p36
    %p38 = scmp.ne.s32.totalorder %s24, %s25
    %p39 = scmp.eq.s32.totalorder %s17, 3
    %p40 = por %p38, %p39
    %p42 = scmp.ne.s32.totalorder %s25, %s41
    %p43 = scmp.eq.s32.totalorder %s17, 0
    %p44 = por %p42, %p43
    %s45 = ssub.s32 %s11, %s18
    %p46 = scmp.eq.s32.totalorder %s45, 0
    %s48 = sadd.s32 %s47, 1
    %s49 = scalar_select %p46, %s47, %s48
    %p52 = pneg %p46
    %p53 = scmp.eq.s32.totalorder %s11, 3
    %p54 = por %p52, %p53
    %p55 = scmp.ne.s32.totalorder %s47, %s50
    %p56 = scmp.eq.s32.totalorder %s11, 0
    %p57 = por %p55, %p56
    %p58 = scmp.ne.s32.totalorder %s47, %s50
    %p59 = scmp.eq.s32.totalorder %s16, 3
    %p60 = por %p58, %p59
    %p61 = scmp.ne.s32.totalorder %s50, %s51
    %p62 = scmp.eq.s32.totalorder %s16, 0
    %p63 = por %p61, %p62
    %p64 = scmp.ne.s32.totalorder %s50, %s51
    %p65 = scmp.eq.s32.totalorder %s17, 3
    %p66 = por %p64, %p65
    %p68 = scmp.ne.s32.totalorder %s51, %s67
    %p69 = scmp.eq.s32.totalorder %s17, 0
    %p70 = por %p68, %p69
    %s71 = ssub.s32 %s11, %s18
    %p72 = scmp.eq.s32.totalorder %s71, 0
    %s74 = sadd.s32 %s73, 1
    %s75 = scalar_select %p72, %s73, %s74
    %p78 = pneg %p72
    %p79 = scmp.eq.s32.totalorder %s11, 3
    %p80 = por %p78, %p79
    %p81 = scmp.ne.s32.totalorder %s73, %s76
    %p82 = scmp.eq.s32.totalorder %s11, 0
    %p83 = por %p81, %p82
    %p84 = scmp.ne.s32.totalorder %s73, %s76
    %p85 = scmp.eq.s32.totalorder %s16, 3
    %p86 = por %p84, %p85
    %p87 = scmp.ne.s32.totalorder %s76, %s77
    %p88 = scmp.eq.s32.totalorder %s16, 0
    %p89 = por %p87, %p88
    %p90 = scmp.ne.s32.totalorder %s76, %s77
    %p91 = scmp.eq.s32.totalorder %s17, 3
    %p92 = por %p90, %p91
    %p94 = scmp.ne.s32.totalorder %s77, %s93
    %p95 = scmp.eq.s32.totalorder %s17, 0
    %p96 = por %p94, %p95
    %s97 = ssub.s32 %s11, %s18
    %p98 = scmp.eq.s32.totalorder %s97, 0
    %s100 = sadd.s32 %s99, 1
    %s101 = scalar_select %p98, %s99, %s100
    %p104 = pneg %p98
    %p105 = scmp.eq.s32.totalorder %s11, 3
    %p106 = por %p104, %p105
    %p107 = scmp.ne.s32.totalorder %s99, %s102
    %p108 = scmp.eq.s32.totalorder %s11, 0
    %p109 = por %p107, %p108
    %p110 = scmp.ne.s32.totalorder %s99, %s102
    %p111 = scmp.eq.s32.totalorder %s16, 3
    %p112 = por %p110, %p111
    %p113 = scmp.ne.s32.totalorder %s102, %s103
    %p114 = scmp.eq.s32.totalorder %s16, 0
    %p115 = por %p113, %p114
    %p116 = scmp.ne.s32.totalorder %s102, %s103
    %p117 = scmp.eq.s32.totalorder %s17, 3
    %p118 = por %p116, %p117
    %p120 = scmp.ne.s32.totalorder %s103, %s119
    %p121 = scmp.eq.s32.totalorder %s17, 0
    %p122 = por %p120, %p121
    %p123 = scmp.le.s32.totalorder 1, %s11
    %p124 = scmp.lt.s32.totalorder %s11, 5
    %p125 = pnand %p123, %p124
    %p126 = pneg %p125
    // Predicated region
    $region9: #{tpu_custom_call.1} parent=5 // pred_check
      _
    $region10: #{tpu_custom_call.1} parent=5 // pred_check_branch
      %128 = sbr.rel (%p125) target = $region12
    $region11: #{tpu_custom_call.1} parent=5 // pred_region
      %s129 = ssub.s32 %s11, 1
    $region12: #{tpu_custom_call.1} parent=5 // pred_fallthru
      _
    %p130 = scmp.lt.s32.totalorder %s11, 4
    // Predicated region
    $region13: #{tpu_custom_call.1} parent=5 // pred_check
      %p131 = pneg %p130
    $region14: #{tpu_custom_call.1} parent=5 // pred_check_branch
      %133 = sbr.rel (%p131) target = $region16
    $region15: #{tpu_custom_call.1} parent=5 // pred_region
      // Predicated region
      $region17: #{tpu_custom_call.1} parent=15 // pred_check
        %p134 = pneg %p31
      $region18: #{tpu_custom_call.1} parent=15 // pred_check_branch
        %136 = sbr.rel (%p134) target = $region20
      $region19: #{tpu_custom_call.1} parent=15 // pred_region
        %s137 = smul.u32 8, %s11
        %p138 = scmp.lt.s32.totalorder %s137, 31
        %s139 = scalar_select %p138, %s137, 31
        %s140 = smul.addr %s139, 7
        %s141 = smul.addr %s140, 8
        %s142 = scalar_lea.vmem %s1, %s141
        %s143 = smul.u32 8, %s11
      $region20: #{tpu_custom_call.1} parent=15 // pred_fallthru
        _
      // Predicated region
      $region21: #{tpu_custom_call.1} parent=15 // pred_check
        %p144 = pneg %p57
      $region22: #{tpu_custom_call.1} parent=15 // pred_check_branch
        %146 = sbr.rel (%p144) target = $region24
      $region23: #{tpu_custom_call.1} parent=15 // pred_region
        %s147 = smul.u32 8, %s11
        %p148 = scmp.lt.s32.totalorder %s147, 31
        %s149 = scalar_select %p148, %s147, 31
        %s150 = smul.addr %s149, 8
        %s151 = scalar_lea.vmem %s2, %s150
        %s152 = smul.u32 8, %s11
      $region24: #{tpu_custom_call.1} parent=15 // pred_fallthru
        _
      // Predicated region
      $region25: #{tpu_custom_call.1} parent=15 // pred_check
        %p153 = pneg %p83
      $region26: #{tpu_custom_call.1} parent=15 // pred_check_branch
        %155 = sbr.rel (%p153) target = $region28
      $region27: #{tpu_custom_call.1} parent=15 // pred_region
        %s156 = smul.u32 8, %s11
        %p157 = scmp.lt.s32.totalorder %s156, 31
        %s158 = scalar_select %p157, %s156, 31
        %s159 = smul.addr %s158, 8
        %s160 = scalar_lea.vmem %s3, %s159
        %s161 = smul.u32 8, %s11
      $region28: #{tpu_custom_call.1} parent=15 // pred_fallthru
        _
    $region16: #{tpu_custom_call.1} parent=5 // pred_fallthru
      _
    %p162 = scmp.le.s32.totalorder 1, %s11
    %p163 = scmp.lt.s32.totalorder %s11, 5
    %p164 = pnand %p162, %p163
    %p165 = pneg %p164
    // Predicated region
    $region29: #{tpu_custom_call.1} parent=5 // pred_check
      _
    $region30: #{tpu_custom_call.1} parent=5 // pred_check_branch
      %167 = sbr.rel (%p164) target = $region32
    $region31: #{tpu_custom_call.1} parent=5 // pred_region
      %s168 = ssub.s32 %s11, 1
      %s169 = smul.u32 8, %s16
      %p170 = scmp.lt.s32.totalorder %s169, 31
      %s171 = scalar_select %p170, %s169, 31
      %s172 = smul.addr %s171, 7
      %s173 = smul.addr %s172, 8
      %s174 = scalar_lea.vmem %s1, %s173
      %p175 = pneg %p37
      %p176 = pneg %p34
      %s177 = smul.u32 8, %s16
      %p178 = scmp.lt.s32.totalorder %s177, 31
      %s179 = scalar_select %p178, %s177, 31
      %s180 = smul.addr %s179, 8
      %s181 = scalar_lea.vmem %s2, %s180
      %p182 = pneg %p63
      %p183 = pneg %p60
      %s184 = smul.u32 8, %s16
      %p185 = scmp.lt.s32.totalorder %s184, 31
      %s186 = scalar_select %p185, %s184, 31
      %s187 = smul.addr %s186, 8
      %s188 = scalar_lea.vmem %s3, %s187
      %p189 = pneg %p89
      %p190 = pneg %p86
      %p191 = pneg %p115
      %p192 = pneg %p112
      %s193 = smul.u32 8, %s16
      %p194 = scmp.lt.s32.totalorder %s193, 31
      %s195 = scalar_select %p194, %s193, 31
      %s196 = smul.addr %s195, 7
      %s197 = smul.addr %s196, 8
      %s198 = scalar_lea.vmem %s4, %s197
      %s199 = smul.u32 8, %s16
      %p200 = scmp.lt.s32.totalorder %s199, 31
      %s201 = scalar_select %p200, %s199, 31
      %s202 = smul.addr %s201, 7
      %s203 = smul.addr %s202, 8
      %s204 = scalar_lea.vmem %s1, %s203
      %s205 = smul.u32 8, %s16
      %s206 = smul.u32 8, %s16
      %p207 = scmp.lt.s32.totalorder %s206, 31
      %s208 = scalar_select %p207, %s206, 31
      %s209 = smul.addr %s208, 8
      %s210 = scalar_lea.vmem %s2, %s209
      %s211 = smul.u32 8, %s16
      %s212 = smul.u32 8, %s16
      %p213 = scmp.lt.s32.totalorder %s212, 31
      %s214 = scalar_select %p213, %s212, 31
      %s215 = smul.addr %s214, 8
      %s216 = scalar_lea.vmem %s3, %s215
      %s217 = smul.u32 8, %s16
      %s218 = smul.u32 8, %s16
      %p219 = scmp.lt.s32.totalorder %s218, 31
      %s220 = scalar_select %p219, %s218, 31
      %s221 = smul.addr %s220, 7
      %s222 = smul.addr %s221, 8
      %s223 = scalar_lea.vmem %s4, %s222
      %s224 = smul.u32 8, %s16
      %v225 = vld [vmem:[%s204] sm:$0xff]
      %v226 = vld [vmem:[%s204 + $0x8] sm:$0xff]
      %v227 = vld [vmem:[%s204 + $0x10] sm:$0xff]
      %v228 = vld [vmem:[%s204 + $0x18] sm:$0xff]
      %v229 = vld [vmem:[%s204 + $0x20] sm:$0xff]
      %v230 = vld [vmem:[%s204 + $0x28] sm:$0xff]
      %v231 = vld [vmem:[%s204 + $0x30] sm:$0xff]
      %v232 = vld [vmem:[%s204 + $0x38] sm:$0xff]
      %v233 = vld [vmem:[%s204 + $0x40] sm:$0xff]
      %v234 = vld [vmem:[%s204 + $0x48] sm:$0xff]
      %v235 = vld [vmem:[%s204 + $0x50] sm:$0xff]
      %v236 = vld [vmem:[%s204 + $0x58] sm:$0xff]
      %v237 = vld [vmem:[%s204 + $0x60] sm:$0xff]
      %v238 = vld [vmem:[%s204 + $0x68] sm:$0xff]
      %v239 = vld [vmem:[%s204 + $0x70] sm:$0xff]
      %v240 = vld [vmem:[%s204 + $0x78] sm:$0xff]
      %v241 = vld [vmem:[%s204 + $0x80] sm:$0xff]
      %v242 = vld [vmem:[%s204 + $0x88] sm:$0xff]
      %v243 = vld [vmem:[%s204 + $0x90] sm:$0xff]
      %v244 = vld [vmem:[%s204 + $0x98] sm:$0xff]
      %v245 = vld [vmem:[%s204 + $0xa0] sm:$0xff]
      %v246 = vld [vmem:[%s204 + $0xa8] sm:$0xff]
      %v247 = vld [vmem:[%s204 + $0xb0] sm:$0xff]
      %v248 = vld [vmem:[%s204 + $0xb8] sm:$0xff]
      %v249 = vld [vmem:[%s204 + $0xc0] sm:$0xff]
      %v250 = vld [vmem:[%s204 + $0xc8] sm:$0xff]
      %v251 = vld [vmem:[%s204 + $0xd0] sm:$0xff]
      %v252 = vld [vmem:[%s204 + $0xd8] sm:$0xff]
      %v253 = vld [vmem:[%s204 + $0xe0] sm:$0xff]
      %v254 = vld [vmem:[%s204 + $0xe8] sm:$0xff]
      %v255 = vld [vmem:[%s204 + $0xf0] sm:$0xff]
      %v256 = vld [vmem:[%s204 + $0xf8] sm:$0xff]
      %v257 = vld [vmem:[%s204 + $0x100] sm:$0xff]
      %v258 = vld [vmem:[%s204 + $0x108] sm:$0xff]
      %v259 = vld [vmem:[%s204 + $0x110] sm:$0xff]
      %v260 = vld [vmem:[%s204 + $0x118] sm:$0xff]
      %v261 = vld [vmem:[%s204 + $0x120] sm:$0xff]
      %v262 = vld [vmem:[%s204 + $0x128] sm:$0xff]
      %v263 = vld [vmem:[%s204 + $0x130] sm:$0xff]
      %v264 = vld [vmem:[%s204 + $0x138] sm:$0xff]
      %v265 = vld [vmem:[%s204 + $0x140] sm:$0xff]
      %v266 = vld [vmem:[%s204 + $0x148] sm:$0xff]
      %v267 = vld [vmem:[%s204 + $0x150] sm:$0xff]
      %v268 = vld [vmem:[%s204 + $0x158] sm:$0xff]
      %v269 = vld [vmem:[%s204 + $0x160] sm:$0xff]
      %v270 = vld [vmem:[%s204 + $0x168] sm:$0xff]
      %v271 = vld [vmem:[%s204 + $0x170] sm:$0xff]
      %v272 = vld [vmem:[%s204 + $0x178] sm:$0xff]
      %v273 = vld [vmem:[%s204 + $0x180] sm:$0xff]
      %v274 = vld [vmem:[%s204 + $0x188] sm:$0xff]
      %v275 = vld [vmem:[%s204 + $0x190] sm:$0xff]
      %v276 = vld [vmem:[%s204 + $0x198] sm:$0xff]
      %v277 = vld [vmem:[%s204 + $0x1a0] sm:$0xff]
      %v278 = vld [vmem:[%s204 + $0x1a8] sm:$0xff]
      %v279 = vld [vmem:[%s204 + $0x1b0] sm:$0xff]
      %v280 = vld [vmem:[%s204 + $0x1b8] sm:$0xff]
      %v281 = vadd.f32 %v225, %v226
      %v282 = vadd.f32 %v281, %v227
      %v283 = vadd.f32 %v282, %v228
      %v284 = vadd.f32 %v283, %v229
      %v285 = vadd.f32 %v284, %v230
      %vm286 = vcmask 130048
      %v287 = vsel %vm286, %v231, 0.0
      %v288 = vadd.f32 %v285, %v287
      %289 = vadd.xlane.f32.xlu0 %v288
      %v290 = vpop.xlane.xlu0 %289
      %v291 = vadd.f32 %v232, %v233
      %v292 = vadd.f32 %v291, %v234
      %v293 = vadd.f32 %v292, %v235
      %v294 = vadd.f32 %v293, %v236
      %v295 = vadd.f32 %v294, %v237
      %v296 = vsel %vm286, %v238, 0.0
      %v297 = vadd.f32 %v295, %v296
      %298 = vadd.xlane.f32.xlu0 %v297
      %v299 = vpop.xlane.xlu0 %298
      %v300 = vadd.f32 %v239, %v240
      %v301 = vadd.f32 %v300, %v241
      %v302 = vadd.f32 %v301, %v242
      %v303 = vadd.f32 %v302, %v243
      %v304 = vadd.f32 %v303, %v244
      %v305 = vsel %vm286, %v245, 0.0
      %v306 = vadd.f32 %v304, %v305
      %307 = vadd.xlane.f32.xlu0 %v306
      %v308 = vpop.xlane.xlu0 %307
      %v309 = vadd.f32 %v246, %v247
      %v310 = vadd.f32 %v309, %v248
      %v311 = vadd.f32 %v310, %v249
      %v312 = vadd.f32 %v311, %v250
      %v313 = vadd.f32 %v312, %v251
      %v314 = vsel %vm286, %v252, 0.0
      %v315 = vadd.f32 %v313, %v314
      %316 = vadd.xlane.f32.xlu0 %v315
      %v317 = vpop.xlane.xlu0 %316
      %v318 = vadd.f32 %v253, %v254
      %v319 = vadd.f32 %v318, %v255
      %v320 = vadd.f32 %v319, %v256
      %v321 = vadd.f32 %v320, %v257
      %v322 = vadd.f32 %v321, %v258
      %v323 = vsel %vm286, %v259, 0.0
      %v324 = vadd.f32 %v322, %v323
      %325 = vadd.xlane.f32.xlu0 %v324
      %v326 = vpop.xlane.xlu0 %325
      %v327 = vadd.f32 %v260, %v261
      %v328 = vadd.f32 %v327, %v262
      %v329 = vadd.f32 %v328, %v263
      %v330 = vadd.f32 %v329, %v264
      %v331 = vadd.f32 %v330, %v265
      %v332 = vsel %vm286, %v266, 0.0
      %v333 = vadd.f32 %v331, %v332
      %334 = vadd.xlane.f32.xlu0 %v333
      %v335 = vpop.xlane.xlu0 %334
      %v336 = vadd.f32 %v267, %v268
      %v337 = vadd.f32 %v336, %v269
      %v338 = vadd.f32 %v337, %v270
      %v339 = vadd.f32 %v338, %v271
      %v340 = vadd.f32 %v339, %v272
      %v341 = vsel %vm286, %v273, 0.0
      %v342 = vadd.f32 %v340, %v341
      %343 = vadd.xlane.f32.xlu0 %v342
      %v344 = vpop.xlane.xlu0 %343
      %v345 = vadd.f32 %v274, %v275
      %v346 = vadd.f32 %v345, %v276
      %v347 = vadd.f32 %v346, %v277
      %v348 = vadd.f32 %v347, %v278
      %v349 = vadd.f32 %v348, %v279
      %v350 = vsel %vm286, %v280, 0.0
      %v351 = vadd.f32 %v349, %v350
      %352 = vadd.xlane.f32.xlu0 %v351
      %v353 = vpop.xlane.xlu0 %352
      %v354 = vmul.f32 %v290, 0.0012755102
      %v355 = vmul.f32 %v299, 0.0012755102
      %v356 = vmul.f32 %v308, 0.0012755102
      %v357 = vmul.f32 %v317, 0.0012755102
      %v358 = vmul.f32 %v326, 0.0012755102
      %v359 = vmul.f32 %v335, 0.0012755102
      %v360 = vmul.f32 %v344, 0.0012755102
      %v361 = vmul.f32 %v353, 0.0012755102
      %v362 = vmul.f32 %v225, %v225
      %v363 = vmul.f32 %v226, %v226
      %v364 = vmul.f32 %v227, %v227
      %v365 = vmul.f32 %v228, %v228
      %v366 = vmul.f32 %v229, %v229
      %v367 = vmul.f32 %v230, %v230
      %v368 = vmul.f32 %v231, %v231
      %v369 = vmul.f32 %v232, %v232
      %v370 = vmul.f32 %v233, %v233
      %v371 = vmul.f32 %v234, %v234
      %v372 = vmul.f32 %v235, %v235
      %v373 = vmul.f32 %v236, %v236
      %v374 = vmul.f32 %v237, %v237
      %v375 = vmul.f32 %v238, %v238
      %v376 = vmul.f32 %v239, %v239
      %v377 = vmul.f32 %v240, %v240
      %v378 = vmul.f32 %v241, %v241
      %v379 = vmul.f32 %v242, %v242
      %v380 = vmul.f32 %v243, %v243
      %v381 = vmul.f32 %v244, %v244
      %v382 = vmul.f32 %v245, %v245
      %v383 = vmul.f32 %v246, %v246
      %v384 = vmul.f32 %v247, %v247
      %v385 = vmul.f32 %v248, %v248
      %v386 = vmul.f32 %v249, %v249
      %v387 = vmul.f32 %v250, %v250
      %v388 = vmul.f32 %v251, %v251
      %v389 = vmul.f32 %v252, %v252
      %v390 = vmul.f32 %v253, %v253
      %v391 = vmul.f32 %v254, %v254
      %v392 = vmul.f32 %v255, %v255
      %v393 = vmul.f32 %v256, %v256
      %v394 = vmul.f32 %v257, %v257
      %v395 = vmul.f32 %v258, %v258
      %v396 = vmul.f32 %v259, %v259
      %v397 = vmul.f32 %v260, %v260
      %v398 = vmul.f32 %v261, %v261
      %v399 = vmul.f32 %v262, %v262
      %v400 = vmul.f32 %v263, %v263
      %v401 = vmul.f32 %v264, %v264
      %v402 = vmul.f32 %v265, %v265
      %v403 = vmul.f32 %v266, %v266
      %v404 = vmul.f32 %v267, %v267
      %v405 = vmul.f32 %v268, %v268
      %v406 = vmul.f32 %v269, %v269
      %v407 = vmul.f32 %v270, %v270
      %v408 = vmul.f32 %v271, %v271
      %v409 = vmul.f32 %v272, %v272
      %v410 = vmul.f32 %v273, %v273
      %v411 = vmul.f32 %v274, %v274
      %v412 = vmul.f32 %v275, %v275
      %v413 = vmul.f32 %v276, %v276
      %v414 = vmul.f32 %v277, %v277
      %v415 = vmul.f32 %v278, %v278
      %v416 = vmul.f32 %v279, %v279
      %v417 = vmul.f32 %v280, %v280
      %v418 = vadd.f32 %v362, %v363
      %v419 = vadd.f32 %v418, %v364
      %v420 = vadd.f32 %v419, %v365
      %v421 = vadd.f32 %v420, %v366
      %v422 = vadd.f32 %v421, %v367
      %v423 = vsel %vm286, %v368, 0.0
      %v424 = vadd.f32 %v422, %v423
      %425 = vadd.xlane.f32.xlu0 %v424
      %v426 = vpop.xlane.xlu0 %425
      %v427 = vadd.f32 %v369, %v370
      %v428 = vadd.f32 %v427, %v371
      %v429 = vadd.f32 %v428, %v372
      %v430 = vadd.f32 %v429, %v373
      %v431 = vadd.f32 %v430, %v374
      %v432 = vsel %vm286, %v375, 0.0
      %v433 = vadd.f32 %v431, %v432
      %434 = vadd.xlane.f32.xlu0 %v433
      %v435 = vpop.xlane.xlu0 %434
      %v436 = vadd.f32 %v376, %v377
      %v437 = vadd.f32 %v436, %v378
      %v438 = vadd.f32 %v437, %v379
      %v439 = vadd.f32 %v438, %v380
      %v440 = vadd.f32 %v439, %v381
      %v441 = vsel %vm286, %v382, 0.0
      %v442 = vadd.f32 %v440, %v441
      %443 = vadd.xlane.f32.xlu0 %v442
      %v444 = vpop.xlane.xlu0 %443
      %v445 = vadd.f32 %v383, %v384
      %v446 = vadd.f32 %v445, %v385
      %v447 = vadd.f32 %v446, %v386
      %v448 = vadd.f32 %v447, %v387
      %v449 = vadd.f32 %v448, %v388
      %v450 = vsel %vm286, %v389, 0.0
      %v451 = vadd.f32 %v449, %v450
      %452 = vadd.xlane.f32.xlu0 %v451
      %v453 = vpop.xlane.xlu0 %452
      %v454 = vadd.f32 %v390, %v391
      %v455 = vadd.f32 %v454, %v392
      %v456 = vadd.f32 %v455, %v393
      %v457 = vadd.f32 %v456, %v394
      %v458 = vadd.f32 %v457, %v395
      %v459 = vsel %vm286, %v396, 0.0
      %v460 = vadd.f32 %v458, %v459
      %461 = vadd.xlane.f32.xlu0 %v460
      %v462 = vpop.xlane.xlu0 %461
      %v463 = vadd.f32 %v397, %v398
      %v464 = vadd.f32 %v463, %v399
      %v465 = vadd.f32 %v464, %v400
      %v466 = vadd.f32 %v465, %v401
      %v467 = vadd.f32 %v466, %v402
      %v468 = vsel %vm286, %v403, 0.0
      %v469 = vadd.f32 %v467, %v468
      %470 = vadd.xlane.f32.xlu0 %v469
      %v471 = vpop.xlane.xlu0 %470
      %v472 = vadd.f32 %v404, %v405
      %v473 = vadd.f32 %v472, %v406
      %v474 = vadd.f32 %v473, %v407
      %v475 = vadd.f32 %v474, %v408
      %v476 = vadd.f32 %v475, %v409
      %v477 = vsel %vm286, %v410, 0.0
      %v478 = vadd.f32 %v476, %v477
      %479 = vadd.xlane.f32.xlu0 %v478
      %v480 = vpop.xlane.xlu0 %479
      %v481 = vadd.f32 %v411, %v412
      %v482 = vadd.f32 %v481, %v413
      %v483 = vadd.f32 %v482, %v414
      %v484 = vadd.f32 %v483, %v415
      %v485 = vadd.f32 %v484, %v416
      %v486 = vsel %vm286, %v417, 0.0
      %v487 = vadd.f32 %v485, %v486
      %488 = vadd.xlane.f32.xlu0 %v487
      %v489 = vpop.xlane.xlu0 %488
      %v490 = vmul.f32 %v426, 0.0012755102
      %v491 = vmul.f32 %v435, 0.0012755102
      %v492 = vmul.f32 %v444, 0.0012755102
      %v493 = vmul.f32 %v453, 0.0012755102
      %v494 = vmul.f32 %v462, 0.0012755102
      %v495 = vmul.f32 %v471, 0.0012755102
      %v496 = vmul.f32 %v480, 0.0012755102
      %v497 = vmul.f32 %v489, 0.0012755102
      %v498 = vmul.f32 %v354, %v354
      %v499 = vmul.f32 %v355, %v355
      %v500 = vmul.f32 %v356, %v356
      %v501 = vmul.f32 %v357, %v357
      %v502 = vmul.f32 %v358, %v358
      %v503 = vmul.f32 %v359, %v359
      %v504 = vmul.f32 %v360, %v360
      %v505 = vmul.f32 %v361, %v361
      %v506 = vsub.f32 %v490, %v498
      %v507 = vsub.f32 %v491, %v499
      %v508 = vsub.f32 %v492, %v500
      %v509 = vsub.f32 %v493, %v501
      %v510 = vsub.f32 %v494, %v502
      %v511 = vsub.f32 %v495, %v503
      %v512 = vsub.f32 %v496, %v504
      %v513 = vsub.f32 %v497, %v505
      %v514 = vadd.f32 %v506, 1e-05
      %v515 = vadd.f32 %v507, 1e-05
      %v516 = vadd.f32 %v508, 1e-05
      %v517 = vadd.f32 %v509, 1e-05
      %v518 = vadd.f32 %v510, 1e-05
      %v519 = vadd.f32 %v511, 1e-05
      %v520 = vadd.f32 %v512, 1e-05
      %v521 = vadd.f32 %v513, 1e-05
      %v522 = vrsqrt.pop %v514
      %v523 = vmul.f32 %v522, %v514
      %v524 = vmul.f32 %v523, %v522
      %v525 = vmul.f32 0.5, %v524
      %v526 = vsub.f32 1.5, %v525
      %v527 = vmul.f32 %v522, %v526
      %vm528 = vweird.f32 %v514
      %vm529 = vweird.f32 %v522
      %vm530 = vmor %vm528, %vm529
      %v531 = vsel %vm530, %v522, %v527
      %v532 = vrsqrt.pop %v515
      %v533 = vmul.f32 %v532, %v515
      %v534 = vmul.f32 %v533, %v532
      %v535 = vmul.f32 0.5, %v534
      %v536 = vsub.f32 1.5, %v535
      %v537 = vmul.f32 %v532, %v536
      %vm538 = vweird.f32 %v515
      %vm539 = vweird.f32 %v532
      %vm540 = vmor %vm538, %vm539
      %v541 = vsel %vm540, %v532, %v537
      %v542 = vrsqrt.pop %v516
      %v543 = vmul.f32 %v542, %v516
      %v544 = vmul.f32 %v543, %v542
      %v545 = vmul.f32 0.5, %v544
      %v546 = vsub.f32 1.5, %v545
      %v547 = vmul.f32 %v542, %v546
      %vm548 = vweird.f32 %v516
      %vm549 = vweird.f32 %v542
      %vm550 = vmor %vm548, %vm549
      %v551 = vsel %vm550, %v542, %v547
      %v552 = vrsqrt.pop %v517
      %v553 = vmul.f32 %v552, %v517
      %v554 = vmul.f32 %v553, %v552
      %v555 = vmul.f32 0.5, %v554
      %v556 = vsub.f32 1.5, %v555
      %v557 = vmul.f32 %v552, %v556
      %vm558 = vweird.f32 %v517
      %vm559 = vweird.f32 %v552
      %vm560 = vmor %vm558, %vm559
      %v561 = vsel %vm560, %v552, %v557
      %v562 = vrsqrt.pop %v518
      %v563 = vmul.f32 %v562, %v518
      %v564 = vmul.f32 %v563, %v562
      %v565 = vmul.f32 0.5, %v564
      %v566 = vsub.f32 1.5, %v565
      %v567 = vmul.f32 %v562, %v566
      %vm568 = vweird.f32 %v518
      %vm569 = vweird.f32 %v562
      %vm570 = vmor %vm568, %vm569
      %v571 = vsel %vm570, %v562, %v567
      %v572 = vrsqrt.pop %v519
      %v573 = vmul.f32 %v572, %v519
      %v574 = vmul.f32 %v573, %v572
      %v575 = vmul.f32 0.5, %v574
      %v576 = vsub.f32 1.5, %v575
      %v577 = vmul.f32 %v572, %v576
      %vm578 = vweird.f32 %v519
      %vm579 = vweird.f32 %v572
      %vm580 = vmor %vm578, %vm579
      %v581 = vsel %vm580, %v572, %v577
      %v582 = vrsqrt.pop %v520
      %v583 = vmul.f32 %v582, %v520
      %v584 = vmul.f32 %v583, %v582
      %v585 = vmul.f32 0.5, %v584
      %v586 = vsub.f32 1.5, %v585
      %v587 = vmul.f32 %v582, %v586
      %vm588 = vweird.f32 %v520
      %vm589 = vweird.f32 %v582
      %vm590 = vmor %vm588, %vm589
      %v591 = vsel %vm590, %v582, %v587
      %v592 = vrsqrt.pop %v521
      %v593 = vmul.f32 %v592, %v521
      %v594 = vmul.f32 %v593, %v592
      %v595 = vmul.f32 0.5, %v594
      %v596 = vsub.f32 1.5, %v595
      %v597 = vmul.f32 %v592, %v596
      %vm598 = vweird.f32 %v521
      %vm599 = vweird.f32 %v592
      %vm600 = vmor %vm598, %vm599
      %v601 = vsel %vm600, %v592, %v597
      %v602 = vld [vmem:[%s210] sm:$0xff]
      %v603 = vld [vmem:[%s210 + $0x8] sm:$0xff]
      %v604 = vld [vmem:[%s210 + $0x10] sm:$0xff]
      %v605 = vld [vmem:[%s210 + $0x18] sm:$0xff]
      %v606 = vld [vmem:[%s210 + $0x20] sm:$0xff]
      %v607 = vld [vmem:[%s210 + $0x28] sm:$0xff]
      %v608 = vld [vmem:[%s210 + $0x30] sm:$0xff]
      %v609 = vld [vmem:[%s210 + $0x38] sm:$0xff]
      %v610 = vmul.f32 %v602, %v531
      %v611 = vmul.f32 %v603, %v541
      %v612 = vmul.f32 %v604, %v551
      %v613 = vmul.f32 %v605, %v561
      %v614 = vmul.f32 %v606, %v571
      %v615 = vmul.f32 %v607, %v581
      %v616 = vmul.f32 %v608, %v591
      %v617 = vmul.f32 %v609, %v601
      %v618 = vmul.f32 %v610, 2.0
      %v619 = vmul.f32 %v611, 2.0
      %v620 = vmul.f32 %v612, 2.0
      %v621 = vmul.f32 %v613, 2.0
      %v622 = vmul.f32 %v614, 2.0
      %v623 = vmul.f32 %v615, 2.0
      %v624 = vmul.f32 %v616, 2.0
      %v625 = vmul.f32 %v617, 2.0
      %v626 = vld [vmem:[%s216] sm:$0xff]
      %v627 = vld [vmem:[%s216 + $0x8] sm:$0xff]
      %v628 = vld [vmem:[%s216 + $0x10] sm:$0xff]
      %v629 = vld [vmem:[%s216 + $0x18] sm:$0xff]
      %v630 = vld [vmem:[%s216 + $0x20] sm:$0xff]
      %v631 = vld [vmem:[%s216 + $0x28] sm:$0xff]
      %v632 = vld [vmem:[%s216 + $0x30] sm:$0xff]
      %v633 = vld [vmem:[%s216 + $0x38] sm:$0xff]
      %v634 = vmul.f32 %v354, %v610
      %v635 = vmul.f32 %v355, %v611
      %v636 = vmul.f32 %v356, %v612
      %v637 = vmul.f32 %v357, %v613
      %v638 = vmul.f32 %v358, %v614
      %v639 = vmul.f32 %v359, %v615
      %v640 = vmul.f32 %v360, %v616
      %v641 = vmul.f32 %v361, %v617
      %v642 = vsub.f32 %v626, %v634
      %v643 = vsub.f32 %v627, %v635
      %v644 = vsub.f32 %v628, %v636
      %v645 = vsub.f32 %v629, %v637
      %v646 = vsub.f32 %v630, %v638
      %v647 = vsub.f32 %v631, %v639
      %v648 = vsub.f32 %v632, %v640
      %v649 = vsub.f32 %v633, %v641
      %v650 = vmul.f32 %v642, 2.0
      %v651 = vmul.f32 %v643, 2.0
      %v652 = vmul.f32 %v644, 2.0
      %v653 = vmul.f32 %v645, 2.0
      %v654 = vmul.f32 %v646, 2.0
      %v655 = vmul.f32 %v647, 2.0
      %v656 = vmul.f32 %v648, 2.0
      %v657 = vmul.f32 %v649, 2.0
      %659 = vset.pattern.permute.xlu0 0
      %660 = vperm.xlu0 %659, %v618
      %v661 = vpop.permute.xlu0 %660
      %664 = vset.pattern.permute.xlu0 0
      %665 = vperm.xlu0 %664, %v619
      %v666 = vpop.permute.xlu0 %665
      %669 = vset.pattern.permute.xlu0 0
      %670 = vperm.xlu0 %669, %v620
      %v671 = vpop.permute.xlu0 %670
      %674 = vset.pattern.permute.xlu0 0
      %675 = vperm.xlu0 %674, %v621
      %v676 = vpop.permute.xlu0 %675
      %679 = vset.pattern.permute.xlu0 0
      %680 = vperm.xlu0 %679, %v622
      %v681 = vpop.permute.xlu0 %680
      %684 = vset.pattern.permute.xlu0 0
      %685 = vperm.xlu0 %684, %v623
      %v686 = vpop.permute.xlu0 %685
      %689 = vset.pattern.permute.xlu0 0
      %690 = vperm.xlu0 %689, %v624
      %v691 = vpop.permute.xlu0 %690
      %694 = vset.pattern.permute.xlu0 0
      %695 = vperm.xlu0 %694, %v625
      %v696 = vpop.permute.xlu0 %695
      %v698 = vmul.f32 %v225, %v661
      %v699 = vmul.f32 %v226, %v661
      %v700 = vmul.f32 %v227, %v661
      %v701 = vmul.f32 %v228, %v661
      %v702 = vmul.f32 %v229, %v661
      %v703 = vmul.f32 %v230, %v661
      %v704 = vmul.f32 %v231, %v661
      %v705 = vmul.f32 %v232, %v666
      %v706 = vmul.f32 %v233, %v666
      %v707 = vmul.f32 %v234, %v666
      %v708 = vmul.f32 %v235, %v666
      %v709 = vmul.f32 %v236, %v666
      %v710 = vmul.f32 %v237, %v666
      %v711 = vmul.f32 %v238, %v666
      %v712 = vmul.f32 %v239, %v671
      %v713 = vmul.f32 %v240, %v671
      %v714 = vmul.f32 %v241, %v671
      %v715 = vmul.f32 %v242, %v671
      %v716 = vmul.f32 %v243, %v671
      %v717 = vmul.f32 %v244, %v671
      %v718 = vmul.f32 %v245, %v671
      %v719 = vmul.f32 %v246, %v676
      %v720 = vmul.f32 %v247, %v676
      %v721 = vmul.f32 %v248, %v676
      %v722 = vmul.f32 %v249, %v676
      %v723 = vmul.f32 %v250, %v676
      %v724 = vmul.f32 %v251, %v676
      %v725 = vmul.f32 %v252, %v676
      %v726 = vmul.f32 %v253, %v681
      %v727 = vmul.f32 %v254, %v681
      %v728 = vmul.f32 %v255, %v681
      %v729 = vmul.f32 %v256, %v681
      %v730 = vmul.f32 %v257, %v681
      %v731 = vmul.f32 %v258, %v681
      %v732 = vmul.f32 %v259, %v681
      %v733 = vmul.f32 %v260, %v686
      %v734 = vmul.f32 %v261, %v686
      %v735 = vmul.f32 %v262, %v686
      %v736 = vmul.f32 %v263, %v686
      %v737 = vmul.f32 %v264, %v686
      %v738 = vmul.f32 %v265, %v686
      %v739 = vmul.f32 %v266, %v686
      %v740 = vmul.f32 %v267, %v691
      %v741 = vmul.f32 %v268, %v691
      %v742 = vmul.f32 %v269, %v691
      %v743 = vmul.f32 %v270, %v691
      %v744 = vmul.f32 %v271, %v691
      %v745 = vmul.f32 %v272, %v691
      %v746 = vmul.f32 %v273, %v691
      %v747 = vmul.f32 %v274, %v696
      %v748 = vmul.f32 %v275, %v696
      %v749 = vmul.f32 %v276, %v696
      %v750 = vmul.f32 %v277, %v696
      %v751 = vmul.f32 %v278, %v696
      %v752 = vmul.f32 %v279, %v696
      %v753 = vmul.f32 %v280, %v696
      %755 = vset.pattern.permute.xlu0 0
      %756 = vperm.xlu0 %755, %v650
      %v757 = vpop.permute.xlu0 %756
      %760 = vset.pattern.permute.xlu0 0
      %761 = vperm.xlu0 %760, %v651
      %v762 = vpop.permute.xlu0 %761
      %765 = vset.pattern.permute.xlu0 0
      %766 = vperm.xlu0 %765, %v652
      %v767 = vpop.permute.xlu0 %766
      %770 = vset.pattern.permute.xlu0 0
      %771 = vperm.xlu0 %770, %v653
      %v772 = vpop.permute.xlu0 %771
      %775 = vset.pattern.permute.xlu0 0
      %776 = vperm.xlu0 %775, %v654
      %v777 = vpop.permute.xlu0 %776
      %780 = vset.pattern.permute.xlu0 0
      %781 = vperm.xlu0 %780, %v655
      %v782 = vpop.permute.xlu0 %781
      %785 = vset.pattern.permute.xlu0 0
      %786 = vperm.xlu0 %785, %v656
      %v787 = vpop.permute.xlu0 %786
      %790 = vset.pattern.permute.xlu0 0
      %791 = vperm.xlu0 %790, %v657
      %v792 = vpop.permute.xlu0 %791
      %v794 = vadd.f32 %v698, %v757
      %v795 = vadd.f32 %v699, %v757
      %v796 = vadd.f32 %v700, %v757
      %v797 = vadd.f32 %v701, %v757
      %v798 = vadd.f32 %v702, %v757
      %v799 = vadd.f32 %v703, %v757
      %v800 = vadd.f32 %v704, %v757
      %v801 = vadd.f32 %v705, %v762
      %v802 = vadd.f32 %v706, %v762
      %v803 = vadd.f32 %v707, %v762
      %v804 = vadd.f32 %v708, %v762
      %v805 = vadd.f32 %v709, %v762
      %v806 = vadd.f32 %v710, %v762
      %v807 = vadd.f32 %v711, %v762
      %v808 = vadd.f32 %v712, %v767
      %v809 = vadd.f32 %v713, %v767
      %v810 = vadd.f32 %v714, %v767
      %v811 = vadd.f32 %v715, %v767
      %v812 = vadd.f32 %v716, %v767
      %v813 = vadd.f32 %v717, %v767
      %v814 = vadd.f32 %v718, %v767
      %v815 = vadd.f32 %v719, %v772
      %v816 = vadd.f32 %v720, %v772
      %v817 = vadd.f32 %v721, %v772
      %v818 = vadd.f32 %v722, %v772
      %v819 = vadd.f32 %v723, %v772
      %v820 = vadd.f32 %v724, %v772
      %v821 = vadd.f32 %v725, %v772
      %v822 = vadd.f32 %v726, %v777
      %v823 = vadd.f32 %v727, %v777
      %v824 = vadd.f32 %v728, %v777
      %v825 = vadd.f32 %v729, %v777
      %v826 = vadd.f32 %v730, %v777
      %v827 = vadd.f32 %v731, %v777
      %v828 = vadd.f32 %v732, %v777
      %v829 = vadd.f32 %v733, %v782
      %v830 = vadd.f32 %v734, %v782
      %v831 = vadd.f32 %v735, %v782
      %v832 = vadd.f32 %v736, %v782
      %v833 = vadd.f32 %v737, %v782
      %v834 = vadd.f32 %v738, %v782
      %v835 = vadd.f32 %v739, %v782
      %v836 = vadd.f32 %v740, %v787
      %v837 = vadd.f32 %v741, %v787
      %v838 = vadd.f32 %v742, %v787
      %v839 = vadd.f32 %v743, %v787
      %v840 = vadd.f32 %v744, %v787
      %v841 = vadd.f32 %v745, %v787
      %v842 = vadd.f32 %v746, %v787
      %v843 = vadd.f32 %v747, %v792
      %v844 = vadd.f32 %v748, %v792
      %v845 = vadd.f32 %v749, %v792
      %v846 = vadd.f32 %v750, %v792
      %v847 = vadd.f32 %v751, %v792
      %v848 = vadd.f32 %v752, %v792
      %v849 = vadd.f32 %v753, %v792
      %v850 = vmax.f32 %v794, 0.0
      %v851 = vmax.f32 %v795, 0.0
      %v852 = vmax.f32 %v796, 0.0
      %v853 = vmax.f32 %v797, 0.0
      %v854 = vmax.f32 %v798, 0.0
      %v855 = vmax.f32 %v799, 0.0
      %v856 = vmax.f32 %v800, 0.0
      %v857 = vmax.f32 %v801, 0.0
      %v858 = vmax.f32 %v802, 0.0
      %v859 = vmax.f32 %v803, 0.0
      %v860 = vmax.f32 %v804, 0.0
      %v861 = vmax.f32 %v805, 0.0
      %v862 = vmax.f32 %v806, 0.0
      %v863 = vmax.f32 %v807, 0.0
      %v864 = vmax.f32 %v808, 0.0
      %v865 = vmax.f32 %v809, 0.0
      %v866 = vmax.f32 %v810, 0.0
      %v867 = vmax.f32 %v811, 0.0
      %v868 = vmax.f32 %v812, 0.0
      %v869 = vmax.f32 %v813, 0.0
      %v870 = vmax.f32 %v814, 0.0
      %v871 = vmax.f32 %v815, 0.0
      %v872 = vmax.f32 %v816, 0.0
      %v873 = vmax.f32 %v817, 0.0
      %v874 = vmax.f32 %v818, 0.0
      %v875 = vmax.f32 %v819, 0.0
      %v876 = vmax.f32 %v820, 0.0
      %v877 = vmax.f32 %v821, 0.0
      %v878 = vmax.f32 %v822, 0.0
      %v879 = vmax.f32 %v823, 0.0
      %v880 = vmax.f32 %v824, 0.0
      %v881 = vmax.f32 %v825, 0.0
      %v882 = vmax.f32 %v826, 0.0
      %v883 = vmax.f32 %v827, 0.0
      %v884 = vmax.f32 %v828, 0.0
      %v885 = vmax.f32 %v829, 0.0
      %v886 = vmax.f32 %v830, 0.0
      %v887 = vmax.f32 %v831, 0.0
      %v888 = vmax.f32 %v832, 0.0
      %v889 = vmax.f32 %v833, 0.0
      %v890 = vmax.f32 %v834, 0.0
      %v891 = vmax.f32 %v835, 0.0
      %v892 = vmax.f32 %v836, 0.0
      %v893 = vmax.f32 %v837, 0.0
      %v894 = vmax.f32 %v838, 0.0
      %v895 = vmax.f32 %v839, 0.0
      %v896 = vmax.f32 %v840, 0.0
      %v897 = vmax.f32 %v841, 0.0
      %v898 = vmax.f32 %v842, 0.0
      %v899 = vmax.f32 %v843, 0.0
      %v900 = vmax.f32 %v844, 0.0
      %v901 = vmax.f32 %v845, 0.0
      %v902 = vmax.f32 %v846, 0.0
      %v903 = vmax.f32 %v847, 0.0
      %v904 = vmax.f32 %v848, 0.0
      %v905 = vmax.f32 %v849, 0.0
      %s906 = smul.u32 %s16, 64
      %v907 = vlaneseq
      %v908 = vshrl.u32 %v907, 7
      %v909 = vadd.s32 %v908, 8
      %v910 = vadd.s32 %v908, 16
      %v911 = vadd.s32 %v908, 24
      %v912 = vadd.s32 %v908, 32
      %v913 = vadd.s32 %v908, 40
      %v914 = vadd.s32 %v908, 48
      %v915 = vadd.s32 %v908, 56
      %v916 = vstv %s906
      %v917 = vadd.s32 %v908, %v916
      %v918 = vadd.s32 %v909, %v916
      %v919 = vadd.s32 %v910, %v916
      %v920 = vadd.s32 %v911, %v916
      %v921 = vadd.s32 %v912, %v916
      %v922 = vadd.s32 %v913, %v916
      %v923 = vadd.s32 %v914, %v916
      %v924 = vadd.s32 %v915, %v916
      %v925 = vlaneseq
      %v926 = vand.u32 %v925, 127
      %v927 = vadd.s32 %v926, 128
      %v928 = vadd.s32 %v926, 256
      %v929 = vadd.s32 %v926, 384
      %v930 = vadd.s32 %v926, 512
      %v931 = vadd.s32 %v926, 640
      %v932 = vadd.s32 %v926, 768
      %v933 = vmul.u32 %v917, 784
      %v934 = vmul.u32 %v918, 784
      %v935 = vmul.u32 %v919, 784
      %v936 = vmul.u32 %v920, 784
      %v937 = vmul.u32 %v921, 784
      %v938 = vmul.u32 %v922, 784
      %v939 = vmul.u32 %v923, 784
      %v940 = vmul.u32 %v924, 784
      %v941 = vadd.s32 %v933, %v926
      %v942 = vadd.s32 %v933, %v927
      %v943 = vadd.s32 %v933, %v928
      %v944 = vadd.s32 %v933, %v929
      %v945 = vadd.s32 %v933, %v930
      %v946 = vadd.s32 %v933, %v931
      %v947 = vadd.s32 %v933, %v932
      %v948 = vadd.s32 %v934, %v926
      %v949 = vadd.s32 %v934, %v927
      %v950 = vadd.s32 %v934, %v928
      %v951 = vadd.s32 %v934, %v929
      %v952 = vadd.s32 %v934, %v930
      %v953 = vadd.s32 %v934, %v931
      %v954 = vadd.s32 %v934, %v932
      %v955 = vadd.s32 %v935, %v926
      %v956 = vadd.s32 %v935, %v927
      %v957 = vadd.s32 %v935, %v928
      %v958 = vadd.s32 %v935, %v929
      %v959 = vadd.s32 %v935, %v930
      %v960 = vadd.s32 %v935, %v931
      %v961 = vadd.s32 %v935, %v932
      %v962 = vadd.s32 %v936, %v926
      %v963 = vadd.s32 %v936, %v927
      %v964 = vadd.s32 %v936, %v928
      %v965 = vadd.s32 %v936, %v929
      %v966 = vadd.s32 %v936, %v930
      %v967 = vadd.s32 %v936, %v931
      %v968 = vadd.s32 %v936, %v932
      %v969 = vadd.s32 %v937, %v926
      %v970 = vadd.s32 %v937, %v927
      %v971 = vadd.s32 %v937, %v928
      %v972 = vadd.s32 %v937, %v929
      %v973 = vadd.s32 %v937, %v930
      %v974 = vadd.s32 %v937, %v931
      %v975 = vadd.s32 %v937, %v932
      %v976 = vadd.s32 %v938, %v926
      %v977 = vadd.s32 %v938, %v927
      %v978 = vadd.s32 %v938, %v928
      %v979 = vadd.s32 %v938, %v929
      %v980 = vadd.s32 %v938, %v930
      %v981 = vadd.s32 %v938, %v931
      %v982 = vadd.s32 %v938, %v932
      %v983 = vadd.s32 %v939, %v926
      %v984 = vadd.s32 %v939, %v927
      %v985 = vadd.s32 %v939, %v928
      %v986 = vadd.s32 %v939, %v929
      %v987 = vadd.s32 %v939, %v930
      %v988 = vadd.s32 %v939, %v931
      %v989 = vadd.s32 %v939, %v932
      %v990 = vadd.s32 %v940, %v926
      %v991 = vadd.s32 %v940, %v927
      %v992 = vadd.s32 %v940, %v928
      %v993 = vadd.s32 %v940, %v929
      %v994 = vadd.s32 %v940, %v930
      %v995 = vadd.s32 %v940, %v931
      %v996 = vadd.s32 %v940, %v932
      %s997 = sld [smem:[#allocation3]]
      %s998 = smul.u32 %s997, 2654435769
      %v999 = vstv %s998
      %v1000 = vadd.s32 %v941, %v999
      %v1001 = vadd.s32 %v942, %v999
      %v1002 = vadd.s32 %v943, %v999
      %v1003 = vadd.s32 %v944, %v999
      %v1004 = vadd.s32 %v945, %v999
      %v1005 = vadd.s32 %v946, %v999
      %v1006 = vadd.s32 %v947, %v999
      %v1007 = vadd.s32 %v948, %v999
      %v1008 = vadd.s32 %v949, %v999
      %v1009 = vadd.s32 %v950, %v999
      %v1010 = vadd.s32 %v951, %v999
      %v1011 = vadd.s32 %v952, %v999
      %v1012 = vadd.s32 %v953, %v999
      %v1013 = vadd.s32 %v954, %v999
      %v1014 = vadd.s32 %v955, %v999
      %v1015 = vadd.s32 %v956, %v999
      %v1016 = vadd.s32 %v957, %v999
      %v1017 = vadd.s32 %v958, %v999
      %v1018 = vadd.s32 %v959, %v999
      %v1019 = vadd.s32 %v960, %v999
      %v1020 = vadd.s32 %v961, %v999
      %v1021 = vadd.s32 %v962, %v999
      %v1022 = vadd.s32 %v963, %v999
      %v1023 = vadd.s32 %v964, %v999
      %v1024 = vadd.s32 %v965, %v999
      %v1025 = vadd.s32 %v966, %v999
      %v1026 = vadd.s32 %v967, %v999
      %v1027 = vadd.s32 %v968, %v999
      %v1028 = vadd.s32 %v969, %v999
      %v1029 = vadd.s32 %v970, %v999
      %v1030 = vadd.s32 %v971, %v999
      %v1031 = vadd.s32 %v972, %v999
      %v1032 = vadd.s32 %v973, %v999
      %v1033 = vadd.s32 %v974, %v999
      %v1034 = vadd.s32 %v975, %v999
      %v1035 = vadd.s32 %v976, %v999
      %v1036 = vadd.s32 %v977, %v999
      %v1037 = vadd.s32 %v978, %v999
      %v1038 = vadd.s32 %v979, %v999
      %v1039 = vadd.s32 %v980, %v999
      %v1040 = vadd.s32 %v981, %v999
      %v1041 = vadd.s32 %v982, %v999
      %v1042 = vadd.s32 %v983, %v999
      %v1043 = vadd.s32 %v984, %v999
      %v1044 = vadd.s32 %v985, %v999
      %v1045 = vadd.s32 %v986, %v999
      %v1046 = vadd.s32 %v987, %v999
      %v1047 = vadd.s32 %v988, %v999
      %v1048 = vadd.s32 %v989, %v999
      %v1049 = vadd.s32 %v990, %v999
      %v1050 = vadd.s32 %v991, %v999
      %v1051 = vadd.s32 %v992, %v999
      %v1052 = vadd.s32 %v993, %v999
      %v1053 = vadd.s32 %v994, %v999
      %v1054 = vadd.s32 %v995, %v999
      %v1055 = vadd.s32 %v996, %v999
      %v1056 = vshrl.u32 %v1000, 16
      %v1057 = vshrl.u32 %v1001, 16
      %v1058 = vshrl.u32 %v1002, 16
      %v1059 = vshrl.u32 %v1003, 16
      %v1060 = vshrl.u32 %v1004, 16
      %v1061 = vshrl.u32 %v1005, 16
      %v1062 = vshrl.u32 %v1006, 16
      %v1063 = vshrl.u32 %v1007, 16
      %v1064 = vshrl.u32 %v1008, 16
      %v1065 = vshrl.u32 %v1009, 16
      %v1066 = vshrl.u32 %v1010, 16
      %v1067 = vshrl.u32 %v1011, 16
      %v1068 = vshrl.u32 %v1012, 16
      %v1069 = vshrl.u32 %v1013, 16
      %v1070 = vshrl.u32 %v1014, 16
      %v1071 = vshrl.u32 %v1015, 16
      %v1072 = vshrl.u32 %v1016, 16
      %v1073 = vshrl.u32 %v1017, 16
      %v1074 = vshrl.u32 %v1018, 16
      %v1075 = vshrl.u32 %v1019, 16
      %v1076 = vshrl.u32 %v1020, 16
      %v1077 = vshrl.u32 %v1021, 16
      %v1078 = vshrl.u32 %v1022, 16
      %v1079 = vshrl.u32 %v1023, 16
      %v1080 = vshrl.u32 %v1024, 16
      %v1081 = vshrl.u32 %v1025, 16
      %v1082 = vshrl.u32 %v1026, 16
      %v1083 = vshrl.u32 %v1027, 16
      %v1084 = vshrl.u32 %v1028, 16
      %v1085 = vshrl.u32 %v1029, 16
      %v1086 = vshrl.u32 %v1030, 16
      %v1087 = vshrl.u32 %v1031, 16
      %v1088 = vshrl.u32 %v1032, 16
      %v1089 = vshrl.u32 %v1033, 16
      %v1090 = vshrl.u32 %v1034, 16
      %v1091 = vshrl.u32 %v1035, 16
      %v1092 = vshrl.u32 %v1036, 16
      %v1093 = vshrl.u32 %v1037, 16
      %v1094 = vshrl.u32 %v1038, 16
      %v1095 = vshrl.u32 %v1039, 16
      %v1096 = vshrl.u32 %v1040, 16
      %v1097 = vshrl.u32 %v1041, 16
      %v1098 = vshrl.u32 %v1042, 16
      %v1099 = vshrl.u32 %v1043, 16
      %v1100 = vshrl.u32 %v1044, 16
      %v1101 = vshrl.u32 %v1045, 16
      %v1102 = vshrl.u32 %v1046, 16
      %v1103 = vshrl.u32 %v1047, 16
      %v1104 = vshrl.u32 %v1048, 16
      %v1105 = vshrl.u32 %v1049, 16
      %v1106 = vshrl.u32 %v1050, 16
      %v1107 = vshrl.u32 %v1051, 16
      %v1108 = vshrl.u32 %v1052, 16
      %v1109 = vshrl.u32 %v1053, 16
      %v1110 = vshrl.u32 %v1054, 16
      %v1111 = vshrl.u32 %v1055, 16
      %v1112 = vxor.u32 %v1000, %v1056
      %v1113 = vxor.u32 %v1001, %v1057
      %v1114 = vxor.u32 %v1002, %v1058
      %v1115 = vxor.u32 %v1003, %v1059
      %v1116 = vxor.u32 %v1004, %v1060
      %v1117 = vxor.u32 %v1005, %v1061
      %v1118 = vxor.u32 %v1006, %v1062
      %v1119 = vxor.u32 %v1007, %v1063
      %v1120 = vxor.u32 %v1008, %v1064
      %v1121 = vxor.u32 %v1009, %v1065
      %v1122 = vxor.u32 %v1010, %v1066
      %v1123 = vxor.u32 %v1011, %v1067
      %v1124 = vxor.u32 %v1012, %v1068
      %v1125 = vxor.u32 %v1013, %v1069
      %v1126 = vxor.u32 %v1014, %v1070
      %v1127 = vxor.u32 %v1015, %v1071
      %v1128 = vxor.u32 %v1016, %v1072
      %v1129 = vxor.u32 %v1017, %v1073
      %v1130 = vxor.u32 %v1018, %v1074
      %v1131 = vxor.u32 %v1019, %v1075
      %v1132 = vxor.u32 %v1020, %v1076
      %v1133 = vxor.u32 %v1021, %v1077
      %v1134 = vxor.u32 %v1022, %v1078
      %v1135 = vxor.u32 %v1023, %v1079
      %v1136 = vxor.u32 %v1024, %v1080
      %v1137 = vxor.u32 %v1025, %v1081
      %v1138 = vxor.u32 %v1026, %v1082
      %v1139 = vxor.u32 %v1027, %v1083
      %v1140 = vxor.u32 %v1028, %v1084
      %v1141 = vxor.u32 %v1029, %v1085
      %v1142 = vxor.u32 %v1030, %v1086
      %v1143 = vxor.u32 %v1031, %v1087
      %v1144 = vxor.u32 %v1032, %v1088
      %v1145 = vxor.u32 %v1033, %v1089
      %v1146 = vxor.u32 %v1034, %v1090
      %v1147 = vxor.u32 %v1035, %v1091
      %v1148 = vxor.u32 %v1036, %v1092
      %v1149 = vxor.u32 %v1037, %v1093
      %v1150 = vxor.u32 %v1038, %v1094
      %v1151 = vxor.u32 %v1039, %v1095
      %v1152 = vxor.u32 %v1040, %v1096
      %v1153 = vxor.u32 %v1041, %v1097
      %v1154 = vxor.u32 %v1042, %v1098
      %v1155 = vxor.u32 %v1043, %v1099
      %v1156 = vxor.u32 %v1044, %v1100
      %v1157 = vxor.u32 %v1045, %v1101
      %v1158 = vxor.u32 %v1046, %v1102
      %v1159 = vxor.u32 %v1047, %v1103
      %v1160 = vxor.u32 %v1048, %v1104
      %v1161 = vxor.u32 %v1049, %v1105
      %v1162 = vxor.u32 %v1050, %v1106
      %v1163 = vxor.u32 %v1051, %v1107
      %v1164 = vxor.u32 %v1052, %v1108
      %v1165 = vxor.u32 %v1053, %v1109
      %v1166 = vxor.u32 %v1054, %v1110
      %v1167 = vxor.u32 %v1055, %v1111
      %v1168 = vmul.u32 %v1112, 2146121005
      %v1169 = vmul.u32 %v1113, 2146121005
      %v1170 = vmul.u32 %v1114, 2146121005
      %v1171 = vmul.u32 %v1115, 2146121005
      %v1172 = vmul.u32 %v1116, 2146121005
      %v1173 = vmul.u32 %v1117, 2146121005
      %v1174 = vmul.u32 %v1118, 2146121005
      %v1175 = vmul.u32 %v1119, 2146121005
      %v1176 = vmul.u32 %v1120, 2146121005
      %v1177 = vmul.u32 %v1121, 2146121005
      %v1178 = vmul.u32 %v1122, 2146121005
      %v1179 = vmul.u32 %v1123, 2146121005
      %v1180 = vmul.u32 %v1124, 2146121005
      %v1181 = vmul.u32 %v1125, 2146121005
      %v1182 = vmul.u32 %v1126, 2146121005
      %v1183 = vmul.u32 %v1127, 2146121005
      %v1184 = vmul.u32 %v1128, 2146121005
      %v1185 = vmul.u32 %v1129, 2146121005
      %v1186 = vmul.u32 %v1130, 2146121005
      %v1187 = vmul.u32 %v1131, 2146121005
      %v1188 = vmul.u32 %v1132, 2146121005
      %v1189 = vmul.u32 %v1133, 2146121005
      %v1190 = vmul.u32 %v1134, 2146121005
      %v1191 = vmul.u32 %v1135, 2146121005
      %v1192 = vmul.u32 %v1136, 2146121005
      %v1193 = vmul.u32 %v1137, 2146121005
      %v1194 = vmul.u32 %v1138, 2146121005
      %v1195 = vmul.u32 %v1139, 2146121005
      %v1196 = vmul.u32 %v1140, 2146121005
      %v1197 = vmul.u32 %v1141, 2146121005
      %v1198 = vmul.u32 %v1142, 2146121005
      %v1199 = vmul.u32 %v1143, 2146121005
      %v1200 = vmul.u32 %v1144, 2146121005
      %v1201 = vmul.u32 %v1145, 2146121005
      %v1202 = vmul.u32 %v1146, 2146121005
      %v1203 = vmul.u32 %v1147, 2146121005
      %v1204 = vmul.u32 %v1148, 2146121005
      %v1205 = vmul.u32 %v1149, 2146121005
      %v1206 = vmul.u32 %v1150, 2146121005
      %v1207 = vmul.u32 %v1151, 2146121005
      %v1208 = vmul.u32 %v1152, 2146121005
      %v1209 = vmul.u32 %v1153, 2146121005
      %v1210 = vmul.u32 %v1154, 2146121005
      %v1211 = vmul.u32 %v1155, 2146121005
      %v1212 = vmul.u32 %v1156, 2146121005
      %v1213 = vmul.u32 %v1157, 2146121005
      %v1214 = vmul.u32 %v1158, 2146121005
      %v1215 = vmul.u32 %v1159, 2146121005
      %v1216 = vmul.u32 %v1160, 2146121005
      %v1217 = vmul.u32 %v1161, 2146121005
      %v1218 = vmul.u32 %v1162, 2146121005
      %v1219 = vmul.u32 %v1163, 2146121005
      %v1220 = vmul.u32 %v1164, 2146121005
      %v1221 = vmul.u32 %v1165, 2146121005
      %v1222 = vmul.u32 %v1166, 2146121005
      %v1223 = vmul.u32 %v1167, 2146121005
      %v1224 = vshrl.u32 %v1168, 15
      %v1225 = vshrl.u32 %v1169, 15
      %v1226 = vshrl.u32 %v1170, 15
      %v1227 = vshrl.u32 %v1171, 15
      %v1228 = vshrl.u32 %v1172, 15
      %v1229 = vshrl.u32 %v1173, 15
      %v1230 = vshrl.u32 %v1174, 15
      %v1231 = vshrl.u32 %v1175, 15
      %v1232 = vshrl.u32 %v1176, 15
      %v1233 = vshrl.u32 %v1177, 15
      %v1234 = vshrl.u32 %v1178, 15
      %v1235 = vshrl.u32 %v1179, 15
      %v1236 = vshrl.u32 %v1180, 15
      %v1237 = vshrl.u32 %v1181, 15
      %v1238 = vshrl.u32 %v1182, 15
      %v1239 = vshrl.u32 %v1183, 15
      %v1240 = vshrl.u32 %v1184, 15
      %v1241 = vshrl.u32 %v1185, 15
      %v1242 = vshrl.u32 %v1186, 15
      %v1243 = vshrl.u32 %v1187, 15
      %v1244 = vshrl.u32 %v1188, 15
      %v1245 = vshrl.u32 %v1189, 15
      %v1246 = vshrl.u32 %v1190, 15
      %v1247 = vshrl.u32 %v1191, 15
      %v1248 = vshrl.u32 %v1192, 15
      %v1249 = vshrl.u32 %v1193, 15
      %v1250 = vshrl.u32 %v1194, 15
      %v1251 = vshrl.u32 %v1195, 15
      %v1252 = vshrl.u32 %v1196, 15
      %v1253 = vshrl.u32 %v1197, 15
      %v1254 = vshrl.u32 %v1198, 15
      %v1255 = vshrl.u32 %v1199, 15
      %v1256 = vshrl.u32 %v1200, 15
      %v1257 = vshrl.u32 %v1201, 15
      %v1258 = vshrl.u32 %v1202, 15
      %v1259 = vshrl.u32 %v1203, 15
      %v1260 = vshrl.u32 %v1204, 15
      %v1261 = vshrl.u32 %v1205, 15
      %v1262 = vshrl.u32 %v1206, 15
      %v1263 = vshrl.u32 %v1207, 15
      %v1264 = vshrl.u32 %v1208, 15
      %v1265 = vshrl.u32 %v1209, 15
      %v1266 = vshrl.u32 %v1210, 15
      %v1267 = vshrl.u32 %v1211, 15
      %v1268 = vshrl.u32 %v1212, 15
      %v1269 = vshrl.u32 %v1213, 15
      %v1270 = vshrl.u32 %v1214, 15
      %v1271 = vshrl.u32 %v1215, 15
      %v1272 = vshrl.u32 %v1216, 15
      %v1273 = vshrl.u32 %v1217, 15
      %v1274 = vshrl.u32 %v1218, 15
      %v1275 = vshrl.u32 %v1219, 15
      %v1276 = vshrl.u32 %v1220, 15
      %v1277 = vshrl.u32 %v1221, 15
      %v1278 = vshrl.u32 %v1222, 15
      %v1279 = vshrl.u32 %v1223, 15
      %v1280 = vxor.u32 %v1168, %v1224
      %v1281 = vxor.u32 %v1169, %v1225
      %v1282 = vxor.u32 %v1170, %v1226
      %v1283 = vxor.u32 %v1171, %v1227
      %v1284 = vxor.u32 %v1172, %v1228
      %v1285 = vxor.u32 %v1173, %v1229
      %v1286 = vxor.u32 %v1174, %v1230
      %v1287 = vxor.u32 %v1175, %v1231
      %v1288 = vxor.u32 %v1176, %v1232
      %v1289 = vxor.u32 %v1177, %v1233
      %v1290 = vxor.u32 %v1178, %v1234
      %v1291 = vxor.u32 %v1179, %v1235
      %v1292 = vxor.u32 %v1180, %v1236
      %v1293 = vxor.u32 %v1181, %v1237
      %v1294 = vxor.u32 %v1182, %v1238
      %v1295 = vxor.u32 %v1183, %v1239
      %v1296 = vxor.u32 %v1184, %v1240
      %v1297 = vxor.u32 %v1185, %v1241
      %v1298 = vxor.u32 %v1186, %v1242
      %v1299 = vxor.u32 %v1187, %v1243
      %v1300 = vxor.u32 %v1188, %v1244
      %v1301 = vxor.u32 %v1189, %v1245
      %v1302 = vxor.u32 %v1190, %v1246
      %v1303 = vxor.u32 %v1191, %v1247
      %v1304 = vxor.u32 %v1192, %v1248
      %v1305 = vxor.u32 %v1193, %v1249
      %v1306 = vxor.u32 %v1194, %v1250
      %v1307 = vxor.u32 %v1195, %v1251
      %v1308 = vxor.u32 %v1196, %v1252
      %v1309 = vxor.u32 %v1197, %v1253
      %v1310 = vxor.u32 %v1198, %v1254
      %v1311 = vxor.u32 %v1199, %v1255
      %v1312 = vxor.u32 %v1200, %v1256
      %v1313 = vxor.u32 %v1201, %v1257
      %v1314 = vxor.u32 %v1202, %v1258
      %v1315 = vxor.u32 %v1203, %v1259
      %v1316 = vxor.u32 %v1204, %v1260
      %v1317 = vxor.u32 %v1205, %v1261
      %v1318 = vxor.u32 %v1206, %v1262
      %v1319 = vxor.u32 %v1207, %v1263
      %v1320 = vxor.u32 %v1208, %v1264
      %v1321 = vxor.u32 %v1209, %v1265
      %v1322 = vxor.u32 %v1210, %v1266
      %v1323 = vxor.u32 %v1211, %v1267
      %v1324 = vxor.u32 %v1212, %v1268
      %v1325 = vxor.u32 %v1213, %v1269
      %v1326 = vxor.u32 %v1214, %v1270
      %v1327 = vxor.u32 %v1215, %v1271
      %v1328 = vxor.u32 %v1216, %v1272
      %v1329 = vxor.u32 %v1217, %v1273
      %v1330 = vxor.u32 %v1218, %v1274
      %v1331 = vxor.u32 %v1219, %v1275
      %v1332 = vxor.u32 %v1220, %v1276
      %v1333 = vxor.u32 %v1221, %v1277
      %v1334 = vxor.u32 %v1222, %v1278
      %v1335 = vxor.u32 %v1223, %v1279
      %v1336 = vmul.u32 %v1280, 2221713035
      %v1337 = vmul.u32 %v1281, 2221713035
      %v1338 = vmul.u32 %v1282, 2221713035
      %v1339 = vmul.u32 %v1283, 2221713035
      %v1340 = vmul.u32 %v1284, 2221713035
      %v1341 = vmul.u32 %v1285, 2221713035
      %v1342 = vmul.u32 %v1286, 2221713035
      %v1343 = vmul.u32 %v1287, 2221713035
      %v1344 = vmul.u32 %v1288, 2221713035
      %v1345 = vmul.u32 %v1289, 2221713035
      %v1346 = vmul.u32 %v1290, 2221713035
      %v1347 = vmul.u32 %v1291, 2221713035
      %v1348 = vmul.u32 %v1292, 2221713035
      %v1349 = vmul.u32 %v1293, 2221713035
      %v1350 = vmul.u32 %v1294, 2221713035
      %v1351 = vmul.u32 %v1295, 2221713035
      %v1352 = vmul.u32 %v1296, 2221713035
      %v1353 = vmul.u32 %v1297, 2221713035
      %v1354 = vmul.u32 %v1298, 2221713035
      %v1355 = vmul.u32 %v1299, 2221713035
      %v1356 = vmul.u32 %v1300, 2221713035
      %v1357 = vmul.u32 %v1301, 2221713035
      %v1358 = vmul.u32 %v1302, 2221713035
      %v1359 = vmul.u32 %v1303, 2221713035
      %v1360 = vmul.u32 %v1304, 2221713035
      %v1361 = vmul.u32 %v1305, 2221713035
      %v1362 = vmul.u32 %v1306, 2221713035
      %v1363 = vmul.u32 %v1307, 2221713035
      %v1364 = vmul.u32 %v1308, 2221713035
      %v1365 = vmul.u32 %v1309, 2221713035
      %v1366 = vmul.u32 %v1310, 2221713035
      %v1367 = vmul.u32 %v1311, 2221713035
      %v1368 = vmul.u32 %v1312, 2221713035
      %v1369 = vmul.u32 %v1313, 2221713035
      %v1370 = vmul.u32 %v1314, 2221713035
      %v1371 = vmul.u32 %v1315, 2221713035
      %v1372 = vmul.u32 %v1316, 2221713035
      %v1373 = vmul.u32 %v1317, 2221713035
      %v1374 = vmul.u32 %v1318, 2221713035
      %v1375 = vmul.u32 %v1319, 2221713035
      %v1376 = vmul.u32 %v1320, 2221713035
      %v1377 = vmul.u32 %v1321, 2221713035
      %v1378 = vmul.u32 %v1322, 2221713035
      %v1379 = vmul.u32 %v1323, 2221713035
      %v1380 = vmul.u32 %v1324, 2221713035
      %v1381 = vmul.u32 %v1325, 2221713035
      %v1382 = vmul.u32 %v1326, 2221713035
      %v1383 = vmul.u32 %v1327, 2221713035
      %v1384 = vmul.u32 %v1328, 2221713035
      %v1385 = vmul.u32 %v1329, 2221713035
      %v1386 = vmul.u32 %v1330, 2221713035
      %v1387 = vmul.u32 %v1331, 2221713035
      %v1388 = vmul.u32 %v1332, 2221713035
      %v1389 = vmul.u32 %v1333, 2221713035
      %v1390 = vmul.u32 %v1334, 2221713035
      %v1391 = vmul.u32 %v1335, 2221713035
      %v1392 = vshrl.u32 %v1336, 16
      %v1393 = vshrl.u32 %v1337, 16
      %v1394 = vshrl.u32 %v1338, 16
      %v1395 = vshrl.u32 %v1339, 16
      %v1396 = vshrl.u32 %v1340, 16
      %v1397 = vshrl.u32 %v1341, 16
      %v1398 = vshrl.u32 %v1342, 16
      %v1399 = vshrl.u32 %v1343, 16
      %v1400 = vshrl.u32 %v1344, 16
      %v1401 = vshrl.u32 %v1345, 16
      %v1402 = vshrl.u32 %v1346, 16
      %v1403 = vshrl.u32 %v1347, 16
      %v1404 = vshrl.u32 %v1348, 16
      %v1405 = vshrl.u32 %v1349, 16
      %v1406 = vshrl.u32 %v1350, 16
      %v1407 = vshrl.u32 %v1351, 16
      %v1408 = vshrl.u32 %v1352, 16
      %v1409 = vshrl.u32 %v1353, 16
      %v1410 = vshrl.u32 %v1354, 16
      %v1411 = vshrl.u32 %v1355, 16
      %v1412 = vshrl.u32 %v1356, 16
      %v1413 = vshrl.u32 %v1357, 16
      %v1414 = vshrl.u32 %v1358, 16
      %v1415 = vshrl.u32 %v1359, 16
      %v1416 = vshrl.u32 %v1360, 16
      %v1417 = vshrl.u32 %v1361, 16
      %v1418 = vshrl.u32 %v1362, 16
      %v1419 = vshrl.u32 %v1363, 16
      %v1420 = vshrl.u32 %v1364, 16
      %v1421 = vshrl.u32 %v1365, 16
      %v1422 = vshrl.u32 %v1366, 16
      %v1423 = vshrl.u32 %v1367, 16
      %v1424 = vshrl.u32 %v1368, 16
      %v1425 = vshrl.u32 %v1369, 16
      %v1426 = vshrl.u32 %v1370, 16
      %v1427 = vshrl.u32 %v1371, 16
      %v1428 = vshrl.u32 %v1372, 16
      %v1429 = vshrl.u32 %v1373, 16
      %v1430 = vshrl.u32 %v1374, 16
      %v1431 = vshrl.u32 %v1375, 16
      %v1432 = vshrl.u32 %v1376, 16
      %v1433 = vshrl.u32 %v1377, 16
      %v1434 = vshrl.u32 %v1378, 16
      %v1435 = vshrl.u32 %v1379, 16
      %v1436 = vshrl.u32 %v1380, 16
      %v1437 = vshrl.u32 %v1381, 16
      %v1438 = vshrl.u32 %v1382, 16
      %v1439 = vshrl.u32 %v1383, 16
      %v1440 = vshrl.u32 %v1384, 16
      %v1441 = vshrl.u32 %v1385, 16
      %v1442 = vshrl.u32 %v1386, 16
      %v1443 = vshrl.u32 %v1387, 16
      %v1444 = vshrl.u32 %v1388, 16
      %v1445 = vshrl.u32 %v1389, 16
      %v1446 = vshrl.u32 %v1390, 16
      %v1447 = vshrl.u32 %v1391, 16
      %v1448 = vxor.u32 %v1336, %v1392
      %v1449 = vxor.u32 %v1337, %v1393
      %v1450 = vxor.u32 %v1338, %v1394
      %v1451 = vxor.u32 %v1339, %v1395
      %v1452 = vxor.u32 %v1340, %v1396
      %v1453 = vxor.u32 %v1341, %v1397
      %v1454 = vxor.u32 %v1342, %v1398
      %v1455 = vxor.u32 %v1343, %v1399
      %v1456 = vxor.u32 %v1344, %v1400
      %v1457 = vxor.u32 %v1345, %v1401
      %v1458 = vxor.u32 %v1346, %v1402
      %v1459 = vxor.u32 %v1347, %v1403
      %v1460 = vxor.u32 %v1348, %v1404
      %v1461 = vxor.u32 %v1349, %v1405
      %v1462 = vxor.u32 %v1350, %v1406
      %v1463 = vxor.u32 %v1351, %v1407
      %v1464 = vxor.u32 %v1352, %v1408
      %v1465 = vxor.u32 %v1353, %v1409
      %v1466 = vxor.u32 %v1354, %v1410
      %v1467 = vxor.u32 %v1355, %v1411
      %v1468 = vxor.u32 %v1356, %v1412
      %v1469 = vxor.u32 %v1357, %v1413
      %v1470 = vxor.u32 %v1358, %v1414
      %v1471 = vxor.u32 %v1359, %v1415
      %v1472 = vxor.u32 %v1360, %v1416
      %v1473 = vxor.u32 %v1361, %v1417
      %v1474 = vxor.u32 %v1362, %v1418
      %v1475 = vxor.u32 %v1363, %v1419
      %v1476 = vxor.u32 %v1364, %v1420
      %v1477 = vxor.u32 %v1365, %v1421
      %v1478 = vxor.u32 %v1366, %v1422
      %v1479 = vxor.u32 %v1367, %v1423
      %v1480 = vxor.u32 %v1368, %v1424
      %v1481 = vxor.u32 %v1369, %v1425
      %v1482 = vxor.u32 %v1370, %v1426
      %v1483 = vxor.u32 %v1371, %v1427
      %v1484 = vxor.u32 %v1372, %v1428
      %v1485 = vxor.u32 %v1373, %v1429
      %v1486 = vxor.u32 %v1374, %v1430
      %v1487 = vxor.u32 %v1375, %v1431
      %v1488 = vxor.u32 %v1376, %v1432
      %v1489 = vxor.u32 %v1377, %v1433
      %v1490 = vxor.u32 %v1378, %v1434
      %v1491 = vxor.u32 %v1379, %v1435
      %v1492 = vxor.u32 %v1380, %v1436
      %v1493 = vxor.u32 %v1381, %v1437
      %v1494 = vxor.u32 %v1382, %v1438
      %v1495 = vxor.u32 %v1383, %v1439
      %v1496 = vxor.u32 %v1384, %v1440
      %v1497 = vxor.u32 %v1385, %v1441
      %v1498 = vxor.u32 %v1386, %v1442
      %v1499 = vxor.u32 %v1387, %v1443
      %v1500 = vxor.u32 %v1388, %v1444
      %v1501 = vxor.u32 %v1389, %v1445
      %v1502 = vxor.u32 %v1390, %v1446
      %v1503 = vxor.u32 %v1391, %v1447
      %v1504 = vand.u32 %v1448, 2147483648
      %v1505 = vand.u32 %v1449, 2147483648
      %v1506 = vand.u32 %v1450, 2147483648
      %v1507 = vand.u32 %v1451, 2147483648
      %v1508 = vand.u32 %v1452, 2147483648
      %v1509 = vand.u32 %v1453, 2147483648
      %v1510 = vand.u32 %v1454, 2147483648
      %v1511 = vand.u32 %v1455, 2147483648
      %v1512 = vand.u32 %v1456, 2147483648
      %v1513 = vand.u32 %v1457, 2147483648
      %v1514 = vand.u32 %v1458, 2147483648
      %v1515 = vand.u32 %v1459, 2147483648
      %v1516 = vand.u32 %v1460, 2147483648
      %v1517 = vand.u32 %v1461, 2147483648
      %v1518 = vand.u32 %v1462, 2147483648
      %v1519 = vand.u32 %v1463, 2147483648
      %v1520 = vand.u32 %v1464, 2147483648
      %v1521 = vand.u32 %v1465, 2147483648
      %v1522 = vand.u32 %v1466, 2147483648
      %v1523 = vand.u32 %v1467, 2147483648
      %v1524 = vand.u32 %v1468, 2147483648
      %v1525 = vand.u32 %v1469, 2147483648
      %v1526 = vand.u32 %v1470, 2147483648
      %v1527 = vand.u32 %v1471, 2147483648
      %v1528 = vand.u32 %v1472, 2147483648
      %v1529 = vand.u32 %v1473, 2147483648
      %v1530 = vand.u32 %v1474, 2147483648
      %v1531 = vand.u32 %v1475, 2147483648
      %v1532 = vand.u32 %v1476, 2147483648
      %v1533 = vand.u32 %v1477, 2147483648
      %v1534 = vand.u32 %v1478, 2147483648
      %v1535 = vand.u32 %v1479, 2147483648
      %v1536 = vand.u32 %v1480, 2147483648
      %v1537 = vand.u32 %v1481, 2147483648
      %v1538 = vand.u32 %v1482, 2147483648
      %v1539 = vand.u32 %v1483, 2147483648
      %v1540 = vand.u32 %v1484, 2147483648
      %v1541 = vand.u32 %v1485, 2147483648
      %v1542 = vand.u32 %v1486, 2147483648
      %v1543 = vand.u32 %v1487, 2147483648
      %v1544 = vand.u32 %v1488, 2147483648
      %v1545 = vand.u32 %v1489, 2147483648
      %v1546 = vand.u32 %v1490, 2147483648
      %v1547 = vand.u32 %v1491, 2147483648
      %v1548 = vand.u32 %v1492, 2147483648
      %v1549 = vand.u32 %v1493, 2147483648
      %v1550 = vand.u32 %v1494, 2147483648
      %v1551 = vand.u32 %v1495, 2147483648
      %v1552 = vand.u32 %v1496, 2147483648
      %v1553 = vand.u32 %v1497, 2147483648
      %v1554 = vand.u32 %v1498, 2147483648
      %v1555 = vand.u32 %v1499, 2147483648
      %v1556 = vand.u32 %v1500, 2147483648
      %v1557 = vand.u32 %v1501, 2147483648
      %v1558 = vand.u32 %v1502, 2147483648
      %v1559 = vand.u32 %v1503, 2147483648
      %vm1560 = vcmp.eq.s32.totalorder %v1504, 0
      %vm1561 = vcmp.eq.s32.totalorder %v1505, 0
      %vm1562 = vcmp.eq.s32.totalorder %v1506, 0
      %vm1563 = vcmp.eq.s32.totalorder %v1507, 0
      %vm1564 = vcmp.eq.s32.totalorder %v1508, 0
      %vm1565 = vcmp.eq.s32.totalorder %v1509, 0
      %vm1566 = vcmp.eq.s32.totalorder %v1510, 0
      %vm1567 = vcmp.eq.s32.totalorder %v1511, 0
      %vm1568 = vcmp.eq.s32.totalorder %v1512, 0
      %vm1569 = vcmp.eq.s32.totalorder %v1513, 0
      %vm1570 = vcmp.eq.s32.totalorder %v1514, 0
      %vm1571 = vcmp.eq.s32.totalorder %v1515, 0
      %vm1572 = vcmp.eq.s32.totalorder %v1516, 0
      %vm1573 = vcmp.eq.s32.totalorder %v1517, 0
      %vm1574 = vcmp.eq.s32.totalorder %v1518, 0
      %vm1575 = vcmp.eq.s32.totalorder %v1519, 0
      %vm1576 = vcmp.eq.s32.totalorder %v1520, 0
      %vm1577 = vcmp.eq.s32.totalorder %v1521, 0
      %vm1578 = vcmp.eq.s32.totalorder %v1522, 0
      %vm1579 = vcmp.eq.s32.totalorder %v1523, 0
      %vm1580 = vcmp.eq.s32.totalorder %v1524, 0
      %vm1581 = vcmp.eq.s32.totalorder %v1525, 0
      %vm1582 = vcmp.eq.s32.totalorder %v1526, 0
      %vm1583 = vcmp.eq.s32.totalorder %v1527, 0
      %vm1584 = vcmp.eq.s32.totalorder %v1528, 0
      %vm1585 = vcmp.eq.s32.totalorder %v1529, 0
      %vm1586 = vcmp.eq.s32.totalorder %v1530, 0
      %vm1587 = vcmp.eq.s32.totalorder %v1531, 0
      %vm1588 = vcmp.eq.s32.totalorder %v1532, 0
      %vm1589 = vcmp.eq.s32.totalorder %v1533, 0
      %vm1590 = vcmp.eq.s32.totalorder %v1534, 0
      %vm1591 = vcmp.eq.s32.totalorder %v1535, 0
      %vm1592 = vcmp.eq.s32.totalorder %v1536, 0
      %vm1593 = vcmp.eq.s32.totalorder %v1537, 0
      %vm1594 = vcmp.eq.s32.totalorder %v1538, 0
      %vm1595 = vcmp.eq.s32.totalorder %v1539, 0
      %vm1596 = vcmp.eq.s32.totalorder %v1540, 0
      %vm1597 = vcmp.eq.s32.totalorder %v1541, 0
      %vm1598 = vcmp.eq.s32.totalorder %v1542, 0
      %vm1599 = vcmp.eq.s32.totalorder %v1543, 0
      %vm1600 = vcmp.eq.s32.totalorder %v1544, 0
      %vm1601 = vcmp.eq.s32.totalorder %v1545, 0
      %vm1602 = vcmp.eq.s32.totalorder %v1546, 0
      %vm1603 = vcmp.eq.s32.totalorder %v1547, 0
      %vm1604 = vcmp.eq.s32.totalorder %v1548, 0
      %vm1605 = vcmp.eq.s32.totalorder %v1549, 0
      %vm1606 = vcmp.eq.s32.totalorder %v1550, 0
      %vm1607 = vcmp.eq.s32.totalorder %v1551, 0
      %vm1608 = vcmp.eq.s32.totalorder %v1552, 0
      %vm1609 = vcmp.eq.s32.totalorder %v1553, 0
      %vm1610 = vcmp.eq.s32.totalorder %v1554, 0
      %vm1611 = vcmp.eq.s32.totalorder %v1555, 0
      %vm1612 = vcmp.eq.s32.totalorder %v1556, 0
      %vm1613 = vcmp.eq.s32.totalorder %v1557, 0
      %vm1614 = vcmp.eq.s32.totalorder %v1558, 0
      %vm1615 = vcmp.eq.s32.totalorder %v1559, 0
      %v1616 = vsel %vm1560, %v850, 0.0
      %v1617 = vsel %vm1561, %v851, 0.0
      %v1618 = vsel %vm1562, %v852, 0.0
      %v1619 = vsel %vm1563, %v853, 0.0
      %v1620 = vsel %vm1564, %v854, 0.0
      %v1621 = vsel %vm1565, %v855, 0.0
      %v1622 = vsel %vm1566, %v856, 0.0
      %v1623 = vsel %vm1567, %v857, 0.0
      %v1624 = vsel %vm1568, %v858, 0.0
      %v1625 = vsel %vm1569, %v859, 0.0
      %v1626 = vsel %vm1570, %v860, 0.0
      %v1627 = vsel %vm1571, %v861, 0.0
      %v1628 = vsel %vm1572, %v862, 0.0
      %v1629 = vsel %vm1573, %v863, 0.0
      %v1630 = vsel %vm1574, %v864, 0.0
      %v1631 = vsel %vm1575, %v865, 0.0
      %v1632 = vsel %vm1576, %v866, 0.0
      %v1633 = vsel %vm1577, %v867, 0.0
      %v1634 = vsel %vm1578, %v868, 0.0
      %v1635 = vsel %vm1579, %v869, 0.0
      %v1636 = vsel %vm1580, %v870, 0.0
      %v1637 = vsel %vm1581, %v871, 0.0
      %v1638 = vsel %vm1582, %v872, 0.0
      %v1639 = vsel %vm1583, %v873, 0.0
      %v1640 = vsel %vm1584, %v874, 0.0
      %v1641 = vsel %vm1585, %v875, 0.0
      %v1642 = vsel %vm1586, %v876, 0.0
      %v1643 = vsel %vm1587, %v877, 0.0
      %v1644 = vsel %vm1588, %v878, 0.0
      %v1645 = vsel %vm1589, %v879, 0.0
      %v1646 = vsel %vm1590, %v880, 0.0
      %v1647 = vsel %vm1591, %v881, 0.0
      %v1648 = vsel %vm1592, %v882, 0.0
      %v1649 = vsel %vm1593, %v883, 0.0
      %v1650 = vsel %vm1594, %v884, 0.0
      %v1651 = vsel %vm1595, %v885, 0.0
      %v1652 = vsel %vm1596, %v886, 0.0
      %v1653 = vsel %vm1597, %v887, 0.0
      %v1654 = vsel %vm1598, %v888, 0.0
      %v1655 = vsel %vm1599, %v889, 0.0
      %v1656 = vsel %vm1600, %v890, 0.0
      %v1657 = vsel %vm1601, %v891, 0.0
      %v1658 = vsel %vm1602, %v892, 0.0
      %v1659 = vsel %vm1603, %v893, 0.0
      %v1660 = vsel %vm1604, %v894, 0.0
      %v1661 = vsel %vm1605, %v895, 0.0
      %v1662 = vsel %vm1606, %v896, 0.0
      %v1663 = vsel %vm1607, %v897, 0.0
      %v1664 = vsel %vm1608, %v898, 0.0
      %v1665 = vsel %vm1609, %v899, 0.0
      %v1666 = vsel %vm1610, %v900, 0.0
      %v1667 = vsel %vm1611, %v901, 0.0
      %v1668 = vsel %vm1612, %v902, 0.0
      %v1669 = vsel %vm1613, %v903, 0.0
      %v1670 = vsel %vm1614, %v904, 0.0
      %v1671 = vsel %vm1615, %v905, 0.0
      %1672 = vst [vmem:[%s223] sm:$0xff] %v1616
      %1673 = vst [vmem:[%s223 + $0x8] sm:$0xff] %v1617
      %1674 = vst [vmem:[%s223 + $0x10] sm:$0xff] %v1618
      %1675 = vst [vmem:[%s223 + $0x18] sm:$0xff] %v1619
      %1676 = vst [vmem:[%s223 + $0x20] sm:$0xff] %v1620
      %1677 = vst [vmem:[%s223 + $0x28] sm:$0xff] %v1621
      %1678 = vst.msk [vmem:[%s223 + $0x30] sm:$0xff] %vm286, %v1622
      %1679 = vst [vmem:[%s223 + $0x38] sm:$0xff] %v1623
      %1680 = vst [vmem:[%s223 + $0x40] sm:$0xff] %v1624
      %1681 = vst [vmem:[%s223 + $0x48] sm:$0xff] %v1625
      %1682 = vst [vmem:[%s223 + $0x50] sm:$0xff] %v1626
      %1683 = vst [vmem:[%s223 + $0x58] sm:$0xff] %v1627
      %1684 = vst [vmem:[%s223 + $0x60] sm:$0xff] %v1628
      %1685 = vst.msk [vmem:[%s223 + $0x68] sm:$0xff] %vm286, %v1629
      %1686 = vst [vmem:[%s223 + $0x70] sm:$0xff] %v1630
      %1687 = vst [vmem:[%s223 + $0x78] sm:$0xff] %v1631
      %1688 = vst [vmem:[%s223 + $0x80] sm:$0xff] %v1632
      %1689 = vst [vmem:[%s223 + $0x88] sm:$0xff] %v1633
      %1690 = vst [vmem:[%s223 + $0x90] sm:$0xff] %v1634
      %1691 = vst [vmem:[%s223 + $0x98] sm:$0xff] %v1635
      %1692 = vst.msk [vmem:[%s223 + $0xa0] sm:$0xff] %vm286, %v1636
      %1693 = vst [vmem:[%s223 + $0xa8] sm:$0xff] %v1637
      %1694 = vst [vmem:[%s223 + $0xb0] sm:$0xff] %v1638
      %1695 = vst [vmem:[%s223 + $0xb8] sm:$0xff] %v1639
      %1696 = vst [vmem:[%s223 + $0xc0] sm:$0xff] %v1640
      %1697 = vst [vmem:[%s223 + $0xc8] sm:$0xff] %v1641
      %1698 = vst [vmem:[%s223 + $0xd0] sm:$0xff] %v1642
      %1699 = vst.msk [vmem:[%s223 + $0xd8] sm:$0xff] %vm286, %v1643
      %1700 = vst [vmem:[%s223 + $0xe0] sm:$0xff] %v1644
      %1701 = vst [vmem:[%s223 + $0xe8] sm:$0xff] %v1645
      %1702 = vst [vmem:[%s223 + $0xf0] sm:$0xff] %v1646
      %1703 = vst [vmem:[%s223 + $0xf8] sm:$0xff] %v1647
      %1704 = vst [vmem:[%s223 + $0x100] sm:$0xff] %v1648
      %1705 = vst [vmem:[%s223 + $0x108] sm:$0xff] %v1649
      %1706 = vst.msk [vmem:[%s223 + $0x110] sm:$0xff] %vm286, %v1650
      %1707 = vst [vmem:[%s223 + $0x118] sm:$0xff] %v1651
      %1708 = vst [vmem:[%s223 + $0x120] sm:$0xff] %v1652
      %1709 = vst [vmem:[%s223 + $0x128] sm:$0xff] %v1653
      %1710 = vst [vmem:[%s223 + $0x130] sm:$0xff] %v1654
      %1711 = vst [vmem:[%s223 + $0x138] sm:$0xff] %v1655
      %1712 = vst [vmem:[%s223 + $0x140] sm:$0xff] %v1656
      %1713 = vst.msk [vmem:[%s223 + $0x148] sm:$0xff] %vm286, %v1657
      %1714 = vst [vmem:[%s223 + $0x150] sm:$0xff] %v1658
      %1715 = vst [vmem:[%s223 + $0x158] sm:$0xff] %v1659
      %1716 = vst [vmem:[%s223 + $0x160] sm:$0xff] %v1660
      %1717 = vst [vmem:[%s223 + $0x168] sm:$0xff] %v1661
      %1718 = vst [vmem:[%s223 + $0x170] sm:$0xff] %v1662
      %1719 = vst [vmem:[%s223 + $0x178] sm:$0xff] %v1663
      %1720 = vst.msk [vmem:[%s223 + $0x180] sm:$0xff] %vm286, %v1664
      %1721 = vst [vmem:[%s223 + $0x188] sm:$0xff] %v1665
      %1722 = vst [vmem:[%s223 + $0x190] sm:$0xff] %v1666
      %1723 = vst [vmem:[%s223 + $0x198] sm:$0xff] %v1667
      %1724 = vst [vmem:[%s223 + $0x1a0] sm:$0xff] %v1668
      %1725 = vst [vmem:[%s223 + $0x1a8] sm:$0xff] %v1669
      %1726 = vst [vmem:[%s223 + $0x1b0] sm:$0xff] %v1670
      %1727 = vst.msk [vmem:[%s223 + $0x1b8] sm:$0xff] %vm286, %v1671
      %s1728 = smul.u32 8, %s16
      %p1729 = scmp.lt.s32.totalorder %s1728, 31
      %s1730 = scalar_select %p1729, %s1728, 31
      %s1731 = smul.addr %s1730, 7
      %s1732 = smul.addr %s1731, 8
      %s1733 = scalar_lea.vmem %s4, %s1732
      // Predicated region
      $region33: #{tpu_custom_call.1} parent=31 // pred_check
        %p1734 = pneg %p112
      $region34: #{tpu_custom_call.1} parent=31 // pred_check_branch
        %1736 = sbr.rel (%p1734) target = $region36
      $region35: #{tpu_custom_call.1} parent=31 // pred_region
        %s1737 = smul.u32 8, %s16
      $region36: #{tpu_custom_call.1} parent=31 // pred_fallthru
        _
    $region32: #{tpu_custom_call.1} parent=5 // pred_fallthru
      _
    %p1738 = scmp.le.s32.totalorder 2, %s11
    // Predicated region
    $region37: #{tpu_custom_call.1} parent=5 // pred_check
      %p1739 = pneg %p1738
    $region38: #{tpu_custom_call.1} parent=5 // pred_check_branch
      %1741 = sbr.rel (%p1739) target = $region40
    $region39: #{tpu_custom_call.1} parent=5 // pred_region
      %s1742 = ssub.s32 %s11, 2
      // Predicated region
      $region41: #{tpu_custom_call.1} parent=39 // pred_check
        %p1743 = pneg %p118
      $region42: #{tpu_custom_call.1} parent=39 // pred_check_branch
        %1745 = sbr.rel (%p1743) target = $region44
      $region43: #{tpu_custom_call.1} parent=39 // pred_region
        %s1746 = smul.u32 8, %s17
        %p1747 = scmp.lt.s32.totalorder %s1746, 31
        %s1748 = scalar_select %p1747, %s1746, 31
        %s1749 = smul.addr %s1748, 7
        %s1750 = smul.addr %s1749, 8
        %s1751 = scalar_lea.vmem %s4, %s1750
      $region44: #{tpu_custom_call.1} parent=39 // pred_fallthru
        _
    $region40: #{tpu_custom_call.1} parent=5 // pred_fallthru
      _
  $region6: #{tpu_custom_call.1} parent=0 // loop_footer
    %s15 = sadd.s32 1, %s11
  $region7: #{tpu_custom_call.1} parent=0 // loop_footer_branch
    %10 = sbr.rel target = $region3
  $region8: #{tpu_custom_call.1} parent=0 // loop_exit
    _

</llo_original>
